<compile_context>
chip_gen: v5e
topology: v5e:2x2
jax: 0.10.0
libtpu: 0.0.40
codegen_flags: <defaults>
</compile_context>

<pallas_src>
import numpy as np

import jax
import jax.numpy as jnp
from jax.experimental import pallas as pl
from jax.experimental.pallas import tpu as pltpu


# -----------------------------------------------------------------------------
# One-time host-side parameter preparation (outside the per-call hot path).
# -----------------------------------------------------------------------------
def _conv_to_mats(w, h_in, w_in, stride, pad):
    """Lower one Conv2d(bias=False) OIHW weight to (R, M) for the fused kernel.

    With X[hi, wi*Cin + ci] the [H, W*C]-flattened input, the conv output in the
    same layout is   out = sum_kh (R[kh] @ X) @ M[kh]   where
      R[kh, ho, hi] = 1  iff  hi == stride*ho - pad + kh          (else 0)
      M[kh, wi*Cin+ci, wo*Cout+co] = w[co, ci, kh, wi - stride*wo + pad]
                                     (0 if that kw index is out of range)
    Zero padding is handled by the all-zero rows of R / masked entries of M.
    """
    cout, cin, ksz_h, ksz_w = w.shape
    h_out = (h_in + 2 * pad - ksz_h) // stride + 1
    w_out = (w_in + 2 * pad - ksz_w) // stride + 1

    kh = np.arange(ksz_h)[:, None, None]
    ho = np.arange(h_out)[None, :, None]
    hi = np.arange(h_in)[None, None, :]
    R = (hi == stride * ho - pad + kh).astype(np.float32)        # [KH, Hout, Hin]

    wi = np.arange(w_in)
    wo = np.arange(w_out)
    kw = wi[:, None] - stride * wo[None, :] + pad                # [Win, Wout]
    valid = (kw >= 0) & (kw < ksz_w)
    kw_c = np.clip(kw, 0, ksz_w - 1)
    g = w[:, :, :, kw_c] * valid[None, None, None, :, :]         # [Cout,Cin,KH,Win,Wout]
    M = np.transpose(g, (2, 3, 1, 4, 0)).reshape(ksz_h, w_in * cin, w_out * cout)
    return R, M, h_out, w_out


def prepare_params(params, h_in=32, w_in=32):
    """params: the 4 OIHW conv weights.  Returns the constant kernel operands."""
    w1, w2, w3, w4 = [np.asarray(p, np.float32) for p in params]

    r1, m1, h, w = _conv_to_mats(w1, h_in, w_in, stride=2, pad=1)
    r2, m2, h, w = _conv_to_mats(w2, h, w, stride=2, pad=1)
    r3, m3, h, w = _conv_to_mats(w3, h, w, stride=2, pad=1)

    # Layer 4: 4x4 conv, stride 1, pad 0 on a 4x4 map -> a plain dot product.
    # w4flat[kh, kw*Cin + ci] = w4[0, ci, kh, kw]  (matches the [H, W*C] layout).
    assert w4.shape[0] == 1 and (h, w) == tuple(w4.shape[2:])
    w4flat = np.transpose(w4[0], (1, 2, 0)).reshape(w4.shape[2], -1)   # [4, 256]

    bf = jnp.bfloat16
    return (jnp.asarray(r1, bf), jnp.asarray(m1, bf),
            jnp.asarray(r2, bf), jnp.asarray(m2, bf),
            jnp.asarray(r3, bf), jnp.asarray(m3, bf),
            jnp.asarray(w4flat, jnp.float32))


# -----------------------------------------------------------------------------
# Fused Pallas kernel: all 4 conv layers for one image per grid step.
# -----------------------------------------------------------------------------
def _discriminator_kernel(x_ref, r1_ref, m1_ref, r2_ref, m2_ref, r3_ref, m3_ref,
                          w4_ref, o_ref):
    def conv(x, r_ref, m_ref):
        xb = x.astype(jnp.bfloat16)                       # bf16 MXU operands
        acc = None
        for kh in range(r_ref.shape[0]):                  # static 4-way unroll
            gathered = jnp.dot(r_ref[kh], xb,             # row gather (exact in bf16)
                               preferred_element_type=jnp.float32
                               ).astype(jnp.bfloat16)
            part = jnp.dot(gathered, m_ref[kh],           # weight apply, f32 accumulate
                           preferred_element_type=jnp.float32)
            acc = part if acc is None else acc + part
        return acc                                        # f32

    def leaky(a):                                         # f32 epilogue (v5e-safe)
        return jnp.where(a > 0, a, 0.2 * a)

    h = x_ref[0]                                          # [32, 96]  bf16
    h = leaky(conv(h, r1_ref, m1_ref))                    # [16, 256] f32
    h = leaky(conv(h, r2_ref, m2_ref))                    # [8, 256]  f32
    h = leaky(conv(h, r3_ref, m3_ref))                    # [4, 256]  f32

    # Final 4x4 / stride 1 / pad 0 conv over the 4x4 map == one dot product.
    prod = h * w4_ref[...]                                # [4, 256] f32, VPU
    z = jnp.sum(prod, axis=1, keepdims=True)              # [4, 1]
    z = jnp.sum(z, axis=0, keepdims=True)                 # [1, 1]
    y = pl.reciprocal(1.0 + jnp.exp(-z), approx=True)     # sigmoid (EUP recip)
    o_ref[...] = y.reshape(o_ref.shape)


def discriminator_forward(prepared, x):
    r1, m1, r2, m2, r3, m3, w4flat = prepared
    b, c, h, w = x.shape
    # Single input layout fix: NCHW -> [B, H, W*C] (rows = height, cols = (w, c)).
    x2 = jnp.transpose(x, (0, 2, 3, 1)).reshape(b, h, w * c).astype(jnp.bfloat16)

    consts = (r1, m1, r2, m2, r3, m3, w4flat)

    def _const_spec(a):
        nd = a.ndim
        return pl.BlockSpec(tuple(a.shape), lambda i: (0,) * nd)

    flops = 0
    for r, m in ((r1, m1), (r2, m2), (r3, m3)):
        ksz, hout, hin = r.shape
        _, wcin, wcout = m.shape
        flops += ksz * 2 * hout * (hin * wcin + wcin * wcout)
    flops = int((flops + 2 * int(w4flat.size)) * b)
    bytes_accessed = int(int(x2.size) * 2
                         + sum(int(a.size) * a.dtype.itemsize for a in consts)
                         + b * 4)

    return pl.pallas_call(
        _discriminator_kernel,
        out_shape=jax.ShapeDtypeStruct((b, 1, 1, 1), jnp.float32),
        grid=(b,),
        in_specs=[pl.BlockSpec((1, h, w * c), lambda i: (i, 0, 0))]
                 + [_const_spec(a) for a in consts],
        out_specs=pl.BlockSpec((1, 1, 1, 1), lambda i: (i, 0, 0, 0)),
        compiler_params=pltpu.CompilerParams(
            dimension_semantics=("parallel",)),
        cost_estimate=pl.CostEstimate(flops=flops,
                                      transcendentals=int(2 * b),
                                      bytes_accessed=bytes_accessed),
    )(x2, *consts)


# -----------------------------------------------------------------------------
# Test harness.
# -----------------------------------------------------------------------------
def init_params(key):
    nc, nf = 3, 16  # featmap_size_discriminator = 16
    shapes = [
        (nf, nc, 4, 4),           # Conv2d(3, 16, 4, 2, 1)
        (2 * nf, nf, 4, 4),       # Conv2d(16, 32, 4, 2, 1)
        (4 * nf, 2 * nf, 4, 4),   # Conv2d(32, 64, 4, 2, 1)
        (1, 4 * nf, 4, 4),        # Conv2d(64, 1, 4, 1, 0)
    ]
    params = []
    for s in shapes:
        key, sub = jax.random.split(key)
        fan_in = s[1] * s[2] * s[3]
        params.append(jax.random.normal(sub, s, jnp.float32) / np.sqrt(fan_in))
    return params


def reference_forward(params, x):
    h = x
    for i, w in enumerate(params):
        stride = 2 if i < 3 else 1
        pad = 1 if i < 3 else 0
        h = jax.lax.conv_general_dilated(
            h, w, (stride, stride), [(pad, pad), (pad, pad)],
            dimension_numbers=("NCHW", "OIHW", "NCHW"))
        h = jnp.where(h > 0, h, 0.2 * h) if i < 3 else jax.nn.sigmoid(h)
    return h


if __name__ == "__main__":
    key = jax.random.PRNGKey(0)
    kx, kp = jax.random.split(key)
    # Architecture implies 32x32 input: 32 -> 16 -> 8 -> 4 -> 1.
    x = jax.random.normal(kx, (2, 3, 32, 32), jnp.float32)
    params = init_params(kp)

    prepared = prepare_params(params)          # one-time host-side weight prep
    fwd = jax.jit(discriminator_forward)

    out = jax.block_until_ready(fwd(prepared, x))
    assert out.shape == (2, 1, 1, 1), out.shape

    ref = reference_forward(params, x)
    assert jnp.allclose(out, ref, rtol=2e-2, atol=2e-2), (out, ref)

    print("KERNEL_OK")
</pallas_src>

<mosaic_0001>
module attributes {stable_mosaic.version = 11 : i64} {
  func.func @_discriminator_kernel(%arg0: i32, %arg1: memref<1x32x96xbf16, #tpu.memory_space<vmem>>, %arg2: memref<4x16x32xbf16, #tpu.memory_space<vmem>>, %arg3: memref<4x96x256xbf16, #tpu.memory_space<vmem>>, %arg4: memref<4x8x16xbf16, #tpu.memory_space<vmem>>, %arg5: memref<4x256x256xbf16, #tpu.memory_space<vmem>>, %arg6: memref<4x4x8xbf16, #tpu.memory_space<vmem>>, %arg7: memref<4x256x256xbf16, #tpu.memory_space<vmem>>, %arg8: memref<4x256xf32, #tpu.memory_space<vmem>>, %arg9: memref<1x1x1x1xf32, #tpu.memory_space<vmem>>) attributes {dimension_semantics = [#tpu.dimension_semantics<parallel>], iteration_bounds = array<i64: 2>, scalar_prefetch = 0 : i64, scratch_operands = 0 : i64, tpu.core_type = #tpu.core_type<tc>, window_params = [{transform_indices = @transform_0, window_bounds = array<i64: 1, 32, 96>}, {pipeline_mode = #tpu.pipeline_mode<synchronous>, transform_indices = @transform_1, window_bounds = array<i64: 4, 16, 32>}, {pipeline_mode = #tpu.pipeline_mode<synchronous>, transform_indices = @transform_2, window_bounds = array<i64: 4, 96, 256>}, {pipeline_mode = #tpu.pipeline_mode<synchronous>, transform_indices = @transform_3, window_bounds = array<i64: 4, 8, 16>}, {pipeline_mode = #tpu.pipeline_mode<synchronous>, transform_indices = @transform_4, window_bounds = array<i64: 4, 256, 256>}, {pipeline_mode = #tpu.pipeline_mode<synchronous>, transform_indices = @transform_5, window_bounds = array<i64: 4, 4, 8>}, {pipeline_mode = #tpu.pipeline_mode<synchronous>, transform_indices = @transform_6, window_bounds = array<i64: 4, 256, 256>}, {pipeline_mode = #tpu.pipeline_mode<synchronous>, transform_indices = @transform_7, window_bounds = array<i64: 4, 256>}, {transform_indices = @transform_8, window_bounds = array<i64: 1, 1, 1, 1>}]} {
    %c0 = arith.constant 0 : index
    %c0_0 = arith.constant 0 : index
    %c0_1 = arith.constant 0 : index
    %0 = vector.load %arg1[%c0, %c0_0, %c0_1] : memref<1x32x96xbf16, #tpu.memory_space<vmem>>, vector<1x32x96xbf16>
    %1 = vector.shape_cast %0 : vector<1x32x96xbf16> to vector<32x96xbf16>
    %c0_2 = arith.constant 0 : index
    %c0_3 = arith.constant 0 : index
    %c0_4 = arith.constant 0 : index
    %2 = vector.load %arg2[%c0_2, %c0_3, %c0_4] : memref<4x16x32xbf16, #tpu.memory_space<vmem>>, vector<1x16x32xbf16>
    %3 = vector.shape_cast %2 : vector<1x16x32xbf16> to vector<16x32xbf16>
    %cst = arith.constant dense<0.000000e+00> : vector<16x96xf32>
    %4 = tpu.matmul %3, %1, %cst {dimension_numbers = #tpu.dot_dimension_numbers<[1], [0], [0], [1], [0, 0, 1, 1], [], []>} : vector<16x32xbf16>, vector<32x96xbf16>, vector<16x96xf32> -> vector<16x96xf32>
    %5 = arith.truncf %4 : vector<16x96xf32> to vector<16x96xbf16>
    %c0_5 = arith.constant 0 : index
    %c0_6 = arith.constant 0 : index
    %c0_7 = arith.constant 0 : index
    %6 = vector.load %arg3[%c0_5, %c0_6, %c0_7] : memref<4x96x256xbf16, #tpu.memory_space<vmem>>, vector<1x96x256xbf16>
    %7 = vector.shape_cast %6 : vector<1x96x256xbf16> to vector<96x256xbf16>
    %cst_8 = arith.constant dense<0.000000e+00> : vector<16x256xf32>
    %8 = tpu.matmul %5, %7, %cst_8 {dimension_numbers = #tpu.dot_dimension_numbers<[1], [0], [0], [1], [0, 0, 1, 1], [], []>} : vector<16x96xbf16>, vector<96x256xbf16>, vector<16x256xf32> -> vector<16x256xf32>
    %c1 = arith.constant 1 : index
    %c0_9 = arith.constant 0 : index
    %c0_10 = arith.constant 0 : index
    %9 = vector.load %arg2[%c1, %c0_9, %c0_10] : memref<4x16x32xbf16, #tpu.memory_space<vmem>>, vector<1x16x32xbf16>
    %10 = vector.shape_cast %9 : vector<1x16x32xbf16> to vector<16x32xbf16>
    %cst_11 = arith.constant dense<0.000000e+00> : vector<16x96xf32>
    %11 = tpu.matmul %10, %1, %cst_11 {dimension_numbers = #tpu.dot_dimension_numbers<[1], [0], [0], [1], [0, 0, 1, 1], [], []>} : vector<16x32xbf16>, vector<32x96xbf16>, vector<16x96xf32> -> vector<16x96xf32>
    %12 = arith.truncf %11 : vector<16x96xf32> to vector<16x96xbf16>
    %c1_12 = arith.constant 1 : index
    %c0_13 = arith.constant 0 : index
    %c0_14 = arith.constant 0 : index
    %13 = vector.load %arg3[%c1_12, %c0_13, %c0_14] : memref<4x96x256xbf16, #tpu.memory_space<vmem>>, vector<1x96x256xbf16>
    %14 = vector.shape_cast %13 : vector<1x96x256xbf16> to vector<96x256xbf16>
    %cst_15 = arith.constant dense<0.000000e+00> : vector<16x256xf32>
    %15 = tpu.matmul %12, %14, %cst_15 {dimension_numbers = #tpu.dot_dimension_numbers<[1], [0], [0], [1], [0, 0, 1, 1], [], []>} : vector<16x96xbf16>, vector<96x256xbf16>, vector<16x256xf32> -> vector<16x256xf32>
    %16 = arith.addf %8, %15 : vector<16x256xf32>
    %c2 = arith.constant 2 : index
    %c0_16 = arith.constant 0 : index
    %c0_17 = arith.constant 0 : index
    %17 = vector.load %arg2[%c2, %c0_16, %c0_17] : memref<4x16x32xbf16, #tpu.memory_space<vmem>>, vector<1x16x32xbf16>
    %18 = vector.shape_cast %17 : vector<1x16x32xbf16> to vector<16x32xbf16>
    %cst_18 = arith.constant dense<0.000000e+00> : vector<16x96xf32>
    %19 = tpu.matmul %18, %1, %cst_18 {dimension_numbers = #tpu.dot_dimension_numbers<[1], [0], [0], [1], [0, 0, 1, 1], [], []>} : vector<16x32xbf16>, vector<32x96xbf16>, vector<16x96xf32> -> vector<16x96xf32>
    %20 = arith.truncf %19 : vector<16x96xf32> to vector<16x96xbf16>
    %c2_19 = arith.constant 2 : index
    %c0_20 = arith.constant 0 : index
    %c0_21 = arith.constant 0 : index
    %21 = vector.load %arg3[%c2_19, %c0_20, %c0_21] : memref<4x96x256xbf16, #tpu.memory_space<vmem>>, vector<1x96x256xbf16>
    %22 = vector.shape_cast %21 : vector<1x96x256xbf16> to vector<96x256xbf16>
    %cst_22 = arith.constant dense<0.000000e+00> : vector<16x256xf32>
    %23 = tpu.matmul %20, %22, %cst_22 {dimension_numbers = #tpu.dot_dimension_numbers<[1], [0], [0], [1], [0, 0, 1, 1], [], []>} : vector<16x96xbf16>, vector<96x256xbf16>, vector<16x256xf32> -> vector<16x256xf32>
    %24 = arith.addf %16, %23 : vector<16x256xf32>
    %c3 = arith.constant 3 : index
    %c0_23 = arith.constant 0 : index
    %c0_24 = arith.constant 0 : index
    %25 = vector.load %arg2[%c3, %c0_23, %c0_24] : memref<4x16x32xbf16, #tpu.memory_space<vmem>>, vector<1x16x32xbf16>
    %26 = vector.shape_cast %25 : vector<1x16x32xbf16> to vector<16x32xbf16>
    %cst_25 = arith.constant dense<0.000000e+00> : vector<16x96xf32>
    %27 = tpu.matmul %26, %1, %cst_25 {dimension_numbers = #tpu.dot_dimension_numbers<[1], [0], [0], [1], [0, 0, 1, 1], [], []>} : vector<16x32xbf16>, vector<32x96xbf16>, vector<16x96xf32> -> vector<16x96xf32>
    %28 = arith.truncf %27 : vector<16x96xf32> to vector<16x96xbf16>
    %c3_26 = arith.constant 3 : index
    %c0_27 = arith.constant 0 : index
    %c0_28 = arith.constant 0 : index
    %29 = vector.load %arg3[%c3_26, %c0_27, %c0_28] : memref<4x96x256xbf16, #tpu.memory_space<vmem>>, vector<1x96x256xbf16>
    %30 = vector.shape_cast %29 : vector<1x96x256xbf16> to vector<96x256xbf16>
    %cst_29 = arith.constant dense<0.000000e+00> : vector<16x256xf32>
    %31 = tpu.matmul %28, %30, %cst_29 {dimension_numbers = #tpu.dot_dimension_numbers<[1], [0], [0], [1], [0, 0, 1, 1], [], []>} : vector<16x96xbf16>, vector<96x256xbf16>, vector<16x256xf32> -> vector<16x256xf32>
    %32 = arith.addf %24, %31 : vector<16x256xf32>
    %cst_30 = arith.constant 0.000000e+00 : f32
    %33 = vector.broadcast %cst_30 : f32 to vector<16x256xf32>
    %34 = arith.cmpf ogt, %32, %33 : vector<16x256xf32>
    %cst_31 = arith.constant 2.000000e-01 : f32
    %35 = vector.broadcast %cst_31 : f32 to vector<16x256xf32>
    %36 = arith.mulf %35, %32 : vector<16x256xf32>
    %37 = arith.select %34, %32, %36 : vector<16x256xi1>, vector<16x256xf32>
    %38 = arith.truncf %37 : vector<16x256xf32> to vector<16x256xbf16>
    %c0_32 = arith.constant 0 : index
    %c0_33 = arith.constant 0 : index
    %c0_34 = arith.constant 0 : index
    %39 = vector.load %arg4[%c0_32, %c0_33, %c0_34] : memref<4x8x16xbf16, #tpu.memory_space<vmem>>, vector<1x8x16xbf16>
    %40 = vector.shape_cast %39 : vector<1x8x16xbf16> to vector<8x16xbf16>
    %cst_35 = arith.constant dense<0.000000e+00> : vector<8x256xf32>
    %41 = tpu.matmul %40, %38, %cst_35 {dimension_numbers = #tpu.dot_dimension_numbers<[1], [0], [0], [1], [0, 0, 1, 1], [], []>} : vector<8x16xbf16>, vector<16x256xbf16>, vector<8x256xf32> -> vector<8x256xf32>
    %42 = arith.truncf %41 : vector<8x256xf32> to vector<8x256xbf16>
    %c0_36 = arith.constant 0 : index
    %c0_37 = arith.constant 0 : index
    %c0_38 = arith.constant 0 : index
    %43 = vector.load %arg5[%c0_36, %c0_37, %c0_38] : memref<4x256x256xbf16, #tpu.memory_space<vmem>>, vector<1x256x256xbf16>
    %44 = vector.shape_cast %43 : vector<1x256x256xbf16> to vector<256x256xbf16>
    %cst_39 = arith.constant dense<0.000000e+00> : vector<8x256xf32>
    %45 = tpu.matmul %42, %44, %cst_39 {dimension_numbers = #tpu.dot_dimension_numbers<[1], [0], [0], [1], [0, 0, 1, 1], [], []>} : vector<8x256xbf16>, vector<256x256xbf16>, vector<8x256xf32> -> vector<8x256xf32>
    %c1_40 = arith.constant 1 : index
    %c0_41 = arith.constant 0 : index
    %c0_42 = arith.constant 0 : index
    %46 = vector.load %arg4[%c1_40, %c0_41, %c0_42] : memref<4x8x16xbf16, #tpu.memory_space<vmem>>, vector<1x8x16xbf16>
    %47 = vector.shape_cast %46 : vector<1x8x16xbf16> to vector<8x16xbf16>
    %cst_43 = arith.constant dense<0.000000e+00> : vector<8x256xf32>
    %48 = tpu.matmul %47, %38, %cst_43 {dimension_numbers = #tpu.dot_dimension_numbers<[1], [0], [0], [1], [0, 0, 1, 1], [], []>} : vector<8x16xbf16>, vector<16x256xbf16>, vector<8x256xf32> -> vector<8x256xf32>
    %49 = arith.truncf %48 : vector<8x256xf32> to vector<8x256xbf16>
    %c1_44 = arith.constant 1 : index
    %c0_45 = arith.constant 0 : index
    %c0_46 = arith.constant 0 : index
    %50 = vector.load %arg5[%c1_44, %c0_45, %c0_46] : memref<4x256x256xbf16, #tpu.memory_space<vmem>>, vector<1x256x256xbf16>
    %51 = vector.shape_cast %50 : vector<1x256x256xbf16> to vector<256x256xbf16>
    %cst_47 = arith.constant dense<0.000000e+00> : vector<8x256xf32>
    %52 = tpu.matmul %49, %51, %cst_47 {dimension_numbers = #tpu.dot_dimension_numbers<[1], [0], [0], [1], [0, 0, 1, 1], [], []>} : vector<8x256xbf16>, vector<256x256xbf16>, vector<8x256xf32> -> vector<8x256xf32>
    %53 = arith.addf %45, %52 : vector<8x256xf32>
    %c2_48 = arith.constant 2 : index
    %c0_49 = arith.constant 0 : index
    %c0_50 = arith.constant 0 : index
    %54 = vector.load %arg4[%c2_48, %c0_49, %c0_50] : memref<4x8x16xbf16, #tpu.memory_space<vmem>>, vector<1x8x16xbf16>
    %55 = vector.shape_cast %54 : vector<1x8x16xbf16> to vector<8x16xbf16>
    %cst_51 = arith.constant dense<0.000000e+00> : vector<8x256xf32>
    %56 = tpu.matmul %55, %38, %cst_51 {dimension_numbers = #tpu.dot_dimension_numbers<[1], [0], [0], [1], [0, 0, 1, 1], [], []>} : vector<8x16xbf16>, vector<16x256xbf16>, vector<8x256xf32> -> vector<8x256xf32>
    %57 = arith.truncf %56 : vector<8x256xf32> to vector<8x256xbf16>
    %c2_52 = arith.constant 2 : index
    %c0_53 = arith.constant 0 : index
    %c0_54 = arith.constant 0 : index
    %58 = vector.load %arg5[%c2_52, %c0_53, %c0_54] : memref<4x256x256xbf16, #tpu.memory_space<vmem>>, vector<1x256x256xbf16>
    %59 = vector.shape_cast %58 : vector<1x256x256xbf16> to vector<256x256xbf16>
    %cst_55 = arith.constant dense<0.000000e+00> : vector<8x256xf32>
    %60 = tpu.matmul %57, %59, %cst_55 {dimension_numbers = #tpu.dot_dimension_numbers<[1], [0], [0], [1], [0, 0, 1, 1], [], []>} : vector<8x256xbf16>, vector<256x256xbf16>, vector<8x256xf32> -> vector<8x256xf32>
    %61 = arith.addf %53, %60 : vector<8x256xf32>
    %c3_56 = arith.constant 3 : index
    %c0_57 = arith.constant 0 : index
    %c0_58 = arith.constant 0 : index
    %62 = vector.load %arg4[%c3_56, %c0_57, %c0_58] : memref<4x8x16xbf16, #tpu.memory_space<vmem>>, vector<1x8x16xbf16>
    %63 = vector.shape_cast %62 : vector<1x8x16xbf16> to vector<8x16xbf16>
    %cst_59 = arith.constant dense<0.000000e+00> : vector<8x256xf32>
    %64 = tpu.matmul %63, %38, %cst_59 {dimension_numbers = #tpu.dot_dimension_numbers<[1], [0], [0], [1], [0, 0, 1, 1], [], []>} : vector<8x16xbf16>, vector<16x256xbf16>, vector<8x256xf32> -> vector<8x256xf32>
    %65 = arith.truncf %64 : vector<8x256xf32> to vector<8x256xbf16>
    %c3_60 = arith.constant 3 : index
    %c0_61 = arith.constant 0 : index
    %c0_62 = arith.constant 0 : index
    %66 = vector.load %arg5[%c3_60, %c0_61, %c0_62] : memref<4x256x256xbf16, #tpu.memory_space<vmem>>, vector<1x256x256xbf16>
    %67 = vector.shape_cast %66 : vector<1x256x256xbf16> to vector<256x256xbf16>
    %cst_63 = arith.constant dense<0.000000e+00> : vector<8x256xf32>
    %68 = tpu.matmul %65, %67, %cst_63 {dimension_numbers = #tpu.dot_dimension_numbers<[1], [0], [0], [1], [0, 0, 1, 1], [], []>} : vector<8x256xbf16>, vector<256x256xbf16>, vector<8x256xf32> -> vector<8x256xf32>
    %69 = arith.addf %61, %68 : vector<8x256xf32>
    %cst_64 = arith.constant 0.000000e+00 : f32
    %70 = vector.broadcast %cst_64 : f32 to vector<8x256xf32>
    %71 = arith.cmpf ogt, %69, %70 : vector<8x256xf32>
    %cst_65 = arith.constant 2.000000e-01 : f32
    %72 = vector.broadcast %cst_65 : f32 to vector<8x256xf32>
    %73 = arith.mulf %72, %69 : vector<8x256xf32>
    %74 = arith.select %71, %69, %73 : vector<8x256xi1>, vector<8x256xf32>
    %75 = arith.truncf %74 : vector<8x256xf32> to vector<8x256xbf16>
    %c0_66 = arith.constant 0 : index
    %c0_67 = arith.constant 0 : index
    %c0_68 = arith.constant 0 : index
    %76 = vector.load %arg6[%c0_66, %c0_67, %c0_68] : memref<4x4x8xbf16, #tpu.memory_space<vmem>>, vector<1x4x8xbf16>
    %77 = vector.shape_cast %76 : vector<1x4x8xbf16> to vector<4x8xbf16>
    %cst_69 = arith.constant dense<0.000000e+00> : vector<4x256xf32>
    %78 = tpu.matmul %77, %75, %cst_69 {dimension_numbers = #tpu.dot_dimension_numbers<[1], [0], [0], [1], [0, 0, 1, 1], [], []>} : vector<4x8xbf16>, vector<8x256xbf16>, vector<4x256xf32> -> vector<4x256xf32>
    %79 = arith.truncf %78 : vector<4x256xf32> to vector<4x256xbf16>
    %c0_70 = arith.constant 0 : index
    %c0_71 = arith.constant 0 : index
    %c0_72 = arith.constant 0 : index
    %80 = vector.load %arg7[%c0_70, %c0_71, %c0_72] : memref<4x256x256xbf16, #tpu.memory_space<vmem>>, vector<1x256x256xbf16>
    %81 = vector.shape_cast %80 : vector<1x256x256xbf16> to vector<256x256xbf16>
    %cst_73 = arith.constant dense<0.000000e+00> : vector<4x256xf32>
    %82 = tpu.matmul %79, %81, %cst_73 {dimension_numbers = #tpu.dot_dimension_numbers<[1], [0], [0], [1], [0, 0, 1, 1], [], []>} : vector<4x256xbf16>, vector<256x256xbf16>, vector<4x256xf32> -> vector<4x256xf32>
    %c1_74 = arith.constant 1 : index
    %c0_75 = arith.constant 0 : index
    %c0_76 = arith.constant 0 : index
    %83 = vector.load %arg6[%c1_74, %c0_75, %c0_76] : memref<4x4x8xbf16, #tpu.memory_space<vmem>>, vector<1x4x8xbf16>
    %84 = vector.shape_cast %83 : vector<1x4x8xbf16> to vector<4x8xbf16>
    %cst_77 = arith.constant dense<0.000000e+00> : vector<4x256xf32>
    %85 = tpu.matmul %84, %75, %cst_77 {dimension_numbers = #tpu.dot_dimension_numbers<[1], [0], [0], [1], [0, 0, 1, 1], [], []>} : vector<4x8xbf16>, vector<8x256xbf16>, vector<4x256xf32> -> vector<4x256xf32>
    %86 = arith.truncf %85 : vector<4x256xf32> to vector<4x256xbf16>
    %c1_78 = arith.constant 1 : index
    %c0_79 = arith.constant 0 : index
    %c0_80 = arith.constant 0 : index
    %87 = vector.load %arg7[%c1_78, %c0_79, %c0_80] : memref<4x256x256xbf16, #tpu.memory_space<vmem>>, vector<1x256x256xbf16>
    %88 = vector.shape_cast %87 : vector<1x256x256xbf16> to vector<256x256xbf16>
    %cst_81 = arith.constant dense<0.000000e+00> : vector<4x256xf32>
    %89 = tpu.matmul %86, %88, %cst_81 {dimension_numbers = #tpu.dot_dimension_numbers<[1], [0], [0], [1], [0, 0, 1, 1], [], []>} : vector<4x256xbf16>, vector<256x256xbf16>, vector<4x256xf32> -> vector<4x256xf32>
    %90 = arith.addf %82, %89 : vector<4x256xf32>
    %c2_82 = arith.constant 2 : index
    %c0_83 = arith.constant 0 : index
    %c0_84 = arith.constant 0 : index
    %91 = vector.load %arg6[%c2_82, %c0_83, %c0_84] : memref<4x4x8xbf16, #tpu.memory_space<vmem>>, vector<1x4x8xbf16>
    %92 = vector.shape_cast %91 : vector<1x4x8xbf16> to vector<4x8xbf16>
    %cst_85 = arith.constant dense<0.000000e+00> : vector<4x256xf32>
    %93 = tpu.matmul %92, %75, %cst_85 {dimension_numbers = #tpu.dot_dimension_numbers<[1], [0], [0], [1], [0, 0, 1, 1], [], []>} : vector<4x8xbf16>, vector<8x256xbf16>, vector<4x256xf32> -> vector<4x256xf32>
    %94 = arith.truncf %93 : vector<4x256xf32> to vector<4x256xbf16>
    %c2_86 = arith.constant 2 : index
    %c0_87 = arith.constant 0 : index
    %c0_88 = arith.constant 0 : index
    %95 = vector.load %arg7[%c2_86, %c0_87, %c0_88] : memref<4x256x256xbf16, #tpu.memory_space<vmem>>, vector<1x256x256xbf16>
    %96 = vector.shape_cast %95 : vector<1x256x256xbf16> to vector<256x256xbf16>
    %cst_89 = arith.constant dense<0.000000e+00> : vector<4x256xf32>
    %97 = tpu.matmul %94, %96, %cst_89 {dimension_numbers = #tpu.dot_dimension_numbers<[1], [0], [0], [1], [0, 0, 1, 1], [], []>} : vector<4x256xbf16>, vector<256x256xbf16>, vector<4x256xf32> -> vector<4x256xf32>
    %98 = arith.addf %90, %97 : vector<4x256xf32>
    %c3_90 = arith.constant 3 : index
    %c0_91 = arith.constant 0 : index
    %c0_92 = arith.constant 0 : index
    %99 = vector.load %arg6[%c3_90, %c0_91, %c0_92] : memref<4x4x8xbf16, #tpu.memory_space<vmem>>, vector<1x4x8xbf16>
    %100 = vector.shape_cast %99 : vector<1x4x8xbf16> to vector<4x8xbf16>
    %cst_93 = arith.constant dense<0.000000e+00> : vector<4x256xf32>
    %101 = tpu.matmul %100, %75, %cst_93 {dimension_numbers = #tpu.dot_dimension_numbers<[1], [0], [0], [1], [0, 0, 1, 1], [], []>} : vector<4x8xbf16>, vector<8x256xbf16>, vector<4x256xf32> -> vector<4x256xf32>
    %102 = arith.truncf %101 : vector<4x256xf32> to vector<4x256xbf16>
    %c3_94 = arith.constant 3 : index
    %c0_95 = arith.constant 0 : index
    %c0_96 = arith.constant 0 : index
    %103 = vector.load %arg7[%c3_94, %c0_95, %c0_96] : memref<4x256x256xbf16, #tpu.memory_space<vmem>>, vector<1x256x256xbf16>
    %104 = vector.shape_cast %103 : vector<1x256x256xbf16> to vector<256x256xbf16>
    %cst_97 = arith.constant dense<0.000000e+00> : vector<4x256xf32>
    %105 = tpu.matmul %102, %104, %cst_97 {dimension_numbers = #tpu.dot_dimension_numbers<[1], [0], [0], [1], [0, 0, 1, 1], [], []>} : vector<4x256xbf16>, vector<256x256xbf16>, vector<4x256xf32> -> vector<4x256xf32>
    %106 = arith.addf %98, %105 : vector<4x256xf32>
    %cst_98 = arith.constant 0.000000e+00 : f32
    %107 = vector.broadcast %cst_98 : f32 to vector<4x256xf32>
    %108 = arith.cmpf ogt, %106, %107 : vector<4x256xf32>
    %cst_99 = arith.constant 2.000000e-01 : f32
    %109 = vector.broadcast %cst_99 : f32 to vector<4x256xf32>
    %110 = arith.mulf %109, %106 : vector<4x256xf32>
    %111 = arith.select %108, %106, %110 : vector<4x256xi1>, vector<4x256xf32>
    %c0_100 = arith.constant 0 : index
    %c0_101 = arith.constant 0 : index
    %112 = vector.load %arg8[%c0_100, %c0_101] : memref<4x256xf32, #tpu.memory_space<vmem>>, vector<4x256xf32>
    %113 = arith.mulf %111, %112 : vector<4x256xf32>
    %cst_102 = arith.constant dense<0.000000e+00> : vector<4xf32>
    %114 = vector.multi_reduction <add>, %113, %cst_102 [1] : vector<4x256xf32> to vector<4xf32>
    %115 = vector.shape_cast %114 : vector<4xf32> to vector<4x1xf32>
    %cst_103 = arith.constant dense<0.000000e+00> : vector<1xf32>
    %116 = vector.multi_reduction <add>, %115, %cst_103 [0] : vector<4x1xf32> to vector<1xf32>
    %117 = vector.shape_cast %116 : vector<1xf32> to vector<1x1xf32>
    %cst_104 = arith.constant 0.000000e+00 : f32
    %118 = vector.broadcast %cst_104 : f32 to vector<1x1xf32>
    %119 = arith.subf %118, %117 : vector<1x1xf32>
    %120 = math.exp %119 : vector<1x1xf32>
    %cst_105 = arith.constant 1.000000e+00 : f32
    %121 = vector.broadcast %cst_105 : f32 to vector<1x1xf32>
    %122 = arith.addf %121, %120 : vector<1x1xf32>
    %123 = tpu.reciprocal %122 {approx = true} : vector<1x1xf32> -> vector<1x1xf32>
    %124 = vector.shape_cast %123 : vector<1x1xf32> to vector<1x1x1x1xf32>
    %c0_106 = arith.constant 0 : index
    %c0_107 = arith.constant 0 : index
    %c0_108 = arith.constant 0 : index
    %c0_109 = arith.constant 0 : index
    %125 = vector.load %arg9[%c0_106, %c0_107, %c0_108, %c0_109] : memref<1x1x1x1xf32, #tpu.memory_space<vmem>>, vector<1x1x1x1xf32>
    tpu.vector_store %arg9[%c0_106, %c0_107, %c0_108, %c0_109], %124 {strides = array<i32>} : memref<1x1x1x1xf32, #tpu.memory_space<vmem>>, vector<1x1x1x1xf32>,
    return
  }
  func.func @transform_0(%arg0: i32) -> (i32, i32, i32) {
    %c0_i32 = arith.constant 0 : i32
    %c0_i32_0 = arith.constant 0 : i32
    %c0_i32_1 = arith.constant 0 : i32
    return %arg0, %c0_i32, %c0_i32_0 : i32, i32, i32
  }
  func.func @transform_1(%arg0: i32) -> (i32, i32, i32) {
    %c0_i32 = arith.constant 0 : i32
    %c0_i32_0 = arith.constant 0 : i32
    %c0_i32_1 = arith.constant 0 : i32
    %c0_i32_2 = arith.constant 0 : i32
    return %c0_i32, %c0_i32_0, %c0_i32_1 : i32, i32, i32
  }
  func.func @transform_2(%arg0: i32) -> (i32, i32, i32) {
    %c0_i32 = arith.constant 0 : i32
    %c0_i32_0 = arith.constant 0 : i32
    %c0_i32_1 = arith.constant 0 : i32
    %c0_i32_2 = arith.constant 0 : i32
    return %c0_i32, %c0_i32_0, %c0_i32_1 : i32, i32, i32
  }
  func.func @transform_3(%arg0: i32) -> (i32, i32, i32) {
    %c0_i32 = arith.constant 0 : i32
    %c0_i32_0 = arith.constant 0 : i32
    %c0_i32_1 = arith.constant 0 : i32
    %c0_i32_2 = arith.constant 0 : i32
    return %c0_i32, %c0_i32_0, %c0_i32_1 : i32, i32, i32
  }
  func.func @transform_4(%arg0: i32) -> (i32, i32, i32) {
    %c0_i32 = arith.constant 0 : i32
    %c0_i32_0 = arith.constant 0 : i32
    %c0_i32_1 = arith.constant 0 : i32
    %c0_i32_2 = arith.constant 0 : i32
    return %c0_i32, %c0_i32_0, %c0_i32_1 : i32, i32, i32
  }
  func.func @transform_5(%arg0: i32) -> (i32, i32, i32) {
    %c0_i32 = arith.constant 0 : i32
    %c0_i32_0 = arith.constant 0 : i32
    %c0_i32_1 = arith.constant 0 : i32
    %c0_i32_2 = arith.constant 0 : i32
    return %c0_i32, %c0_i32_0, %c0_i32_1 : i32, i32, i32
  }
  func.func @transform_6(%arg0: i32) -> (i32, i32, i32) {
    %c0_i32 = arith.constant 0 : i32
    %c0_i32_0 = arith.constant 0 : i32
    %c0_i32_1 = arith.constant 0 : i32
    %c0_i32_2 = arith.constant 0 : i32
    return %c0_i32, %c0_i32_0, %c0_i32_1 : i32, i32, i32
  }
  func.func @transform_7(%arg0: i32) -> (i32, i32) {
    %c0_i32 = arith.constant 0 : i32
    %c0_i32_0 = arith.constant 0 : i32
    %c0_i32_1 = arith.constant 0 : i32
    return %c0_i32, %c0_i32_0 : i32, i32
  }
  func.func @transform_8(%arg0: i32) -> (i32, i32, i32, i32) {
    %c0_i32 = arith.constant 0 : i32
    %c0_i32_0 = arith.constant 0 : i32
    %c0_i32_1 = arith.constant 0 : i32
    %c0_i32_2 = arith.constant 0 : i32
    return %arg0, %c0_i32, %c0_i32_0, %c0_i32_1 : i32, i32, i32, i32
  }
}

</mosaic_0001>

<llo_original>
// kernel: discriminator_forward.1
$region0: #{discriminator_forward.1}
  #allocation0 [shape = 'u32[]', space=smem, size = 0x4, offset = 0x4, fixed_abs, tag = 'smem constant byte address 0x4 - core index']
  #allocation1 [shape = 'u32[72,128]{1,0:T(1,128)}', space=vmem, size = 0x9000, scoped, tag = 'internal scratch']
  %s0 = inlined_call_operand.vmem [shape: bf16[2,32,96], index: 0, kind: input, shape index: {}]
  %s1 = inlined_call_operand.vmem [shape: bf16[4,16,32], index: 1, kind: input, shape index: {}]
  %s2 = inlined_call_operand.vmem [shape: bf16[4,96,256], index: 2, kind: input, shape index: {}]
  %s3 = inlined_call_operand.vmem [shape: bf16[4,8,16], index: 3, kind: input, shape index: {}]
  %s4 = inlined_call_operand.hbm [shape: bf16[4,256,256], index: 4, kind: input, shape index: {}]
  %s5 = inlined_call_operand.vmem [shape: bf16[4,4,8], index: 5, kind: input, shape index: {}]
  %s6 = inlined_call_operand.hbm [shape: bf16[4,256,256], index: 6, kind: input, shape index: {}]
  %s7 = inlined_call_operand.vmem [shape: f32[4,256], index: 7, kind: input, shape index: {}]
  %s8 = inlined_call_operand.vmem [shape: f32[2,1,1,1], index: 8, kind: output, shape index: {}]
  %s9 = sld [smem:[#allocation0]]
  $region73: #{discriminator_forward.1} parent=0
    _
  %s11 = ssub.s32 1, %s9
  %s12 = scalar_select 0, %s11, %s9
  $region1: #{discriminator_forward.1} parent=0
    #allocation2 [shape = 'u8[524288]{0}', space=vmem, size = 0x80000, scoped, tag = 'input window, operand 4, single buffered']
    #allocation3 [shape = 's32[2]{0}', space=sflag, size = 0x8, scoped, tag = 'scoped memory for discriminator_forward.1']
    #allocation4 [shape = 'u8[524288]{0}', space=vmem, size = 0x80000, scoped, tag = 'input window, operand 6, single buffered']
    #allocation5 [shape = 's32[1]{0}', space=sflag, size = 0x4, scoped, tag = 'scoped memory for discriminator_forward.1']
    %13 = vsyncpa [#allocation3], 0
    %14 = vsyncpa [#allocation5], 0
    loop: start=0, step=1, limit=4
    $region2: #{discriminator_forward.1} parent=1 // loop_pre_header
      _
    $region3: #{discriminator_forward.1} parent=1 // loop_header
      %s16 = sphi 0, %s20
      %p17 = scmp.ge.s32.totalorder %s16, 4
      %s26 = sphi 0, %s28
      %s29 = sphi 0, %s26
      %s30 = sphi 0, %s29
      %s46 = sphi 0, %s30
      %s50 = sphi 0, %s50
      %s52 = sphi 0, %s50
      %s53 = sphi 0, %s52
      %s67 = sphi 0, %s53
      %s71 = sphi 0, %s71
      %s73 = sphi 0, %s71
      %s74 = sphi 0, %s73
      %s88 = sphi 0, %s74
      %s92 = sphi 0, %s92
      %s94 = sphi 0, %s92
      %s95 = sphi 0, %s94
      %s109 = sphi 0, %s95
      %s113 = sphi 0, %s113
      %s115 = sphi 0, %s113
      %s116 = sphi 0, %s115
      %s130 = sphi 0, %s116
      %s134 = sphi 0, %s134
      %s136 = sphi 0, %s134
      %s137 = sphi 0, %s136
      %s151 = sphi 0, %s137
      %s155 = sphi 0, %s155
      %s157 = sphi 0, %s155
      %s158 = sphi 0, %s157
      %s172 = sphi 0, %s158
      %s176 = sphi 0, %s176
      %s178 = sphi 0, %s176
      %s179 = sphi 0, %s178
      %s193 = sphi 0, %s179
      %s199 = sphi 0, %s201
      %s202 = sphi 0, %s199
      %s203 = sphi 0, %s202
      %s219 = sphi 0, %s203
    $region4: #{discriminator_forward.1} parent=1 // loop_header_branch
      %19 = sbr.rel (%p17) target = $region8
    $region5: #{discriminator_forward.1} parent=1 // loop_body
      %s21 = ssub.s32 %s16, 1
      %s22 = ssub.s32 %s16, 2
      %s23 = sadd.s32 %s16, 1
      %s24 = ssub.s32 %s16, %s23
      %p25 = scmp.eq.s32.totalorder %s24, 0
      %s27 = sadd.s32 %s26, 1
      %s28 = scalar_select %p25, %s26, %s27
      %p31 = pneg %p25
      %p32 = scmp.eq.s32.totalorder %s16, 1
      %p33 = por %p31, %p32
      %p34 = scmp.ne.s32.totalorder %s26, %s29
      %p35 = scmp.eq.s32.totalorder %s16, 0
      %p36 = por %p34, %p35
      %p37 = scmp.ne.s32.totalorder %s26, %s29
      %p38 = scmp.eq.s32.totalorder %s21, 1
      %p39 = por %p37, %p38
      %p40 = scmp.ne.s32.totalorder %s29, %s30
      %p41 = scmp.eq.s32.totalorder %s21, 0
      %p42 = por %p40, %p41
      %p43 = scmp.ne.s32.totalorder %s29, %s30
      %p44 = scmp.eq.s32.totalorder %s22, 1
      %p45 = por %p43, %p44
      %p47 = scmp.ne.s32.totalorder %s30, %s46
      %p48 = scmp.eq.s32.totalorder %s22, 0
      %p49 = por %p47, %p48
      %s51 = sadd.s32 %s50, 1
      %p54 = scmp.eq.s32.totalorder %s16, 1
      %p55 = scmp.ne.s32.totalorder %s50, %s52
      %p56 = scmp.eq.s32.totalorder %s16, 0
      %p57 = por %p55, %p56
      %p58 = scmp.ne.s32.totalorder %s50, %s52
      %p59 = scmp.eq.s32.totalorder %s21, 1
      %p60 = por %p58, %p59
      %p61 = scmp.ne.s32.totalorder %s52, %s53
      %p62 = scmp.eq.s32.totalorder %s21, 0
      %p63 = por %p61, %p62
      %p64 = scmp.ne.s32.totalorder %s52, %s53
      %p65 = scmp.eq.s32.totalorder %s22, 1
      %p66 = por %p64, %p65
      %p68 = scmp.ne.s32.totalorder %s53, %s67
      %p69 = scmp.eq.s32.totalorder %s22, 0
      %p70 = por %p68, %p69
      %s72 = sadd.s32 %s71, 1
      %p75 = scmp.eq.s32.totalorder %s16, 1
      %p76 = scmp.ne.s32.totalorder %s71, %s73
      %p77 = scmp.eq.s32.totalorder %s16, 0
      %p78 = por %p76, %p77
      %p79 = scmp.ne.s32.totalorder %s71, %s73
      %p80 = scmp.eq.s32.totalorder %s21, 1
      %p81 = por %p79, %p80
      %p82 = scmp.ne.s32.totalorder %s73, %s74
      %p83 = scmp.eq.s32.totalorder %s21, 0
      %p84 = por %p82, %p83
      %p85 = scmp.ne.s32.totalorder %s73, %s74
      %p86 = scmp.eq.s32.totalorder %s22, 1
      %p87 = por %p85, %p86
      %p89 = scmp.ne.s32.totalorder %s74, %s88
      %p90 = scmp.eq.s32.totalorder %s22, 0
      %p91 = por %p89, %p90
      %s93 = sadd.s32 %s92, 1
      %p96 = scmp.eq.s32.totalorder %s16, 1
      %p97 = scmp.ne.s32.totalorder %s92, %s94
      %p98 = scmp.eq.s32.totalorder %s16, 0
      %p99 = por %p97, %p98
      %p100 = scmp.ne.s32.totalorder %s92, %s94
      %p101 = scmp.eq.s32.totalorder %s21, 1
      %p102 = por %p100, %p101
      %p103 = scmp.ne.s32.totalorder %s94, %s95
      %p104 = scmp.eq.s32.totalorder %s21, 0
      %p105 = por %p103, %p104
      %p106 = scmp.ne.s32.totalorder %s94, %s95
      %p107 = scmp.eq.s32.totalorder %s22, 1
      %p108 = por %p106, %p107
      %p110 = scmp.ne.s32.totalorder %s95, %s109
      %p111 = scmp.eq.s32.totalorder %s22, 0
      %p112 = por %p110, %p111
      %s114 = sadd.s32 %s113, 1
      %p117 = scmp.eq.s32.totalorder %s16, 1
      %p118 = scmp.ne.s32.totalorder %s113, %s115
      %p119 = scmp.eq.s32.totalorder %s16, 0
      %p120 = por %p118, %p119
      %p121 = scmp.ne.s32.totalorder %s113, %s115
      %p122 = scmp.eq.s32.totalorder %s21, 1
      %p123 = por %p121, %p122
      %p124 = scmp.ne.s32.totalorder %s115, %s116
      %p125 = scmp.eq.s32.totalorder %s21, 0
      %p126 = por %p124, %p125
      %p127 = scmp.ne.s32.totalorder %s115, %s116
      %p128 = scmp.eq.s32.totalorder %s22, 1
      %p129 = por %p127, %p128
      %p131 = scmp.ne.s32.totalorder %s116, %s130
      %p132 = scmp.eq.s32.totalorder %s22, 0
      %p133 = por %p131, %p132
      %s135 = sadd.s32 %s134, 1
      %p138 = scmp.eq.s32.totalorder %s16, 1
      %p139 = scmp.ne.s32.totalorder %s134, %s136
      %p140 = scmp.eq.s32.totalorder %s16, 0
      %p141 = por %p139, %p140
      %p142 = scmp.ne.s32.totalorder %s134, %s136
      %p143 = scmp.eq.s32.totalorder %s21, 1
      %p144 = por %p142, %p143
      %p145 = scmp.ne.s32.totalorder %s136, %s137
      %p146 = scmp.eq.s32.totalorder %s21, 0
      %p147 = por %p145, %p146
      %p148 = scmp.ne.s32.totalorder %s136, %s137
      %p149 = scmp.eq.s32.totalorder %s22, 1
      %p150 = por %p148, %p149
      %p152 = scmp.ne.s32.totalorder %s137, %s151
      %p153 = scmp.eq.s32.totalorder %s22, 0
      %p154 = por %p152, %p153
      %s156 = sadd.s32 %s155, 1
      %p159 = scmp.eq.s32.totalorder %s16, 1
      %p160 = scmp.ne.s32.totalorder %s155, %s157
      %p161 = scmp.eq.s32.totalorder %s16, 0
      %p162 = por %p160, %p161
      %p163 = scmp.ne.s32.totalorder %s155, %s157
      %p164 = scmp.eq.s32.totalorder %s21, 1
      %p165 = por %p163, %p164
      %p166 = scmp.ne.s32.totalorder %s157, %s158
      %p167 = scmp.eq.s32.totalorder %s21, 0
      %p168 = por %p166, %p167
      %p169 = scmp.ne.s32.totalorder %s157, %s158
      %p170 = scmp.eq.s32.totalorder %s22, 1
      %p171 = por %p169, %p170
      %p173 = scmp.ne.s32.totalorder %s158, %s172
      %p174 = scmp.eq.s32.totalorder %s22, 0
      %p175 = por %p173, %p174
      %s177 = sadd.s32 %s176, 1
      %p180 = scmp.eq.s32.totalorder %s16, 1
      %p181 = scmp.ne.s32.totalorder %s176, %s178
      %p182 = scmp.eq.s32.totalorder %s16, 0
      %p183 = por %p181, %p182
      %p184 = scmp.ne.s32.totalorder %s176, %s178
      %p185 = scmp.eq.s32.totalorder %s21, 1
      %p186 = por %p184, %p185
      %p187 = scmp.ne.s32.totalorder %s178, %s179
      %p188 = scmp.eq.s32.totalorder %s21, 0
      %p189 = por %p187, %p188
      %p190 = scmp.ne.s32.totalorder %s178, %s179
      %p191 = scmp.eq.s32.totalorder %s22, 1
      %p192 = por %p190, %p191
      %p194 = scmp.ne.s32.totalorder %s179, %s193
      %p195 = scmp.eq.s32.totalorder %s22, 0
      %p196 = por %p194, %p195
      %s197 = ssub.s32 %s16, %s23
      %p198 = scmp.eq.s32.totalorder %s197, 0
      %s200 = sadd.s32 %s199, 1
      %s201 = scalar_select %p198, %s199, %s200
      %p204 = pneg %p198
      %p205 = scmp.eq.s32.totalorder %s16, 1
      %p206 = por %p204, %p205
      %p207 = scmp.ne.s32.totalorder %s199, %s202
      %p208 = scmp.eq.s32.totalorder %s16, 0
      %p209 = por %p207, %p208
      %p210 = scmp.ne.s32.totalorder %s199, %s202
      %p211 = scmp.eq.s32.totalorder %s21, 1
      %p212 = por %p210, %p211
      %p213 = scmp.ne.s32.totalorder %s202, %s203
      %p214 = scmp.eq.s32.totalorder %s21, 0
      %p215 = por %p213, %p214
      %p216 = scmp.ne.s32.totalorder %s202, %s203
      %p217 = scmp.eq.s32.totalorder %s22, 1
      %p218 = por %p216, %p217
      %p220 = scmp.ne.s32.totalorder %s203, %s219
      %p221 = scmp.eq.s32.totalorder %s22, 0
      %p222 = por %p220, %p221
      %p223 = scmp.le.s32.totalorder 1, %s16
      %p224 = scmp.lt.s32.totalorder %s16, 3
      %p225 = pnand %p223, %p224
      %p226 = pneg %p225
      // Predicated region
      $region9: #{discriminator_forward.1} parent=5 // pred_check
        _
      $region10: #{discriminator_forward.1} parent=5 // pred_check_branch
        %228 = sbr.rel (%p225) target = $region12
      $region11: #{discriminator_forward.1} parent=5 // pred_region
        %s229 = ssub.s32 %s16, 1
        // Predicated region
        $region13: #{discriminator_forward.1} parent=11 // pred_check
          %p230 = pneg %p63
        $region14: #{discriminator_forward.1} parent=11 // pred_check_branch
          %232 = sbr.rel (%p230) target = $region16
        $region15: #{discriminator_forward.1} parent=11 // pred_region
          _
        $region16: #{discriminator_forward.1} parent=11 // pred_fallthru
          _
        // Predicated region
        $region17: #{discriminator_forward.1} parent=11 // pred_check
          %p233 = pneg %p84
        $region18: #{discriminator_forward.1} parent=11 // pred_check_branch
          %235 = sbr.rel (%p233) target = $region20
        $region19: #{discriminator_forward.1} parent=11 // pred_region
          _
        $region20: #{discriminator_forward.1} parent=11 // pred_fallthru
          _
        // Predicated region
        $region21: #{discriminator_forward.1} parent=11 // pred_check
          %p236 = pneg %p105
        $region22: #{discriminator_forward.1} parent=11 // pred_check_branch
          %238 = sbr.rel (%p236) target = $region24
        $region23: #{discriminator_forward.1} parent=11 // pred_region
          _
        $region24: #{discriminator_forward.1} parent=11 // pred_fallthru
          _
        // Predicated region
        $region25: #{discriminator_forward.1} parent=11 // pred_check
          %p239 = pneg %p126
        $region26: #{discriminator_forward.1} parent=11 // pred_check_branch
          %241 = sbr.rel (%p239) target = $region28
        $region27: #{discriminator_forward.1} parent=11 // pred_region
          %243 = vsyncadd [#allocation3], 0
          %s244 = sshll.u32 %s4, 4
          %s245 = int_to_ptr.hbm [resolvable:$true] %s244
          %s246 = sshll.u32 [#allocation2], 4
          %s247 = int_to_ptr.vmem [resolvable:$true] %s246
          %252 = dma.hbm_to_vmem [thread:$0]  %s245, 16384, %s247, [#allocation3], 128, 128, 8
        $region28: #{discriminator_forward.1} parent=11 // pred_fallthru
          _
        // Predicated region
        $region29: #{discriminator_forward.1} parent=11 // pred_check
          %p253 = pneg %p147
        $region30: #{discriminator_forward.1} parent=11 // pred_check_branch
          %255 = sbr.rel (%p253) target = $region32
        $region31: #{discriminator_forward.1} parent=11 // pred_region
          _
        $region32: #{discriminator_forward.1} parent=11 // pred_fallthru
          _
        // Predicated region
        $region33: #{discriminator_forward.1} parent=11 // pred_check
          %p256 = pneg %p168
        $region34: #{discriminator_forward.1} parent=11 // pred_check_branch
          %258 = sbr.rel (%p256) target = $region36
        $region35: #{discriminator_forward.1} parent=11 // pred_region
          %260 = vsyncadd [#allocation5], 0
          %s261 = sshll.u32 %s6, 4
          %s262 = int_to_ptr.hbm [resolvable:$true] %s261
          %s263 = sshll.u32 [#allocation4], 4
          %s264 = int_to_ptr.vmem [resolvable:$true] %s263
          %269 = dma.hbm_to_vmem [thread:$0]  %s262, 16384, %s264, [#allocation5], 128, 128, 8
        $region36: #{discriminator_forward.1} parent=11 // pred_fallthru
          _
        // Predicated region
        $region37: #{discriminator_forward.1} parent=11 // pred_check
          %p270 = pneg %p189
        $region38: #{discriminator_forward.1} parent=11 // pred_check_branch
          %272 = sbr.rel (%p270) target = $region40
        $region39: #{discriminator_forward.1} parent=11 // pred_region
          _
        $region40: #{discriminator_forward.1} parent=11 // pred_fallthru
          _
      $region12: #{discriminator_forward.1} parent=5 // pred_fallthru
        _
      %p273 = scmp.lt.s32.totalorder %s16, 2
      // Predicated region
      $region41: #{discriminator_forward.1} parent=5 // pred_check
        %p274 = pneg %p273
      $region42: #{discriminator_forward.1} parent=5 // pred_check_branch
        %276 = sbr.rel (%p274) target = $region44
      $region43: #{discriminator_forward.1} parent=5 // pred_region
        // Predicated region
        $region45: #{discriminator_forward.1} parent=43 // pred_check
          %p277 = pneg %p36
        $region46: #{discriminator_forward.1} parent=43 // pred_check_branch
          %279 = sbr.rel (%p277) target = $region48
        $region47: #{discriminator_forward.1} parent=43 // pred_region
          %p280 = scmp.lt.s32.totalorder %s16, 1
          %s281 = scalar_select %p280, %s16, 1
          %s282 = smul.addr %s281, 4
          %s283 = smul.addr %s282, 4
          %s284 = scalar_lea.vmem %s0, %s283
        $region48: #{discriminator_forward.1} parent=43 // pred_fallthru
          _
      $region44: #{discriminator_forward.1} parent=5 // pred_fallthru
        _
      %p285 = scmp.le.s32.totalorder 1, %s16
      %p286 = scmp.lt.s32.totalorder %s16, 3
      %p287 = pnand %p285, %p286
      %p288 = pneg %p287
      // Predicated region
      $region49: #{discriminator_forward.1} parent=5 // pred_check
        _
      $region50: #{discriminator_forward.1} parent=5 // pred_check_branch
        %290 = sbr.rel (%p287) target = $region52
      $region51: #{discriminator_forward.1} parent=5 // pred_region
        %s291 = ssub.s32 %s16, 1
        // Predicated region
        $region53: #{discriminator_forward.1} parent=51 // pred_check
          %p292 = pneg %p126
        $region54: #{discriminator_forward.1} parent=51 // pred_check_branch
          %294 = sbr.rel (%p292) target = $region56
        $region55: #{discriminator_forward.1} parent=51 // pred_region
          %296 = dma.done [#allocation3], 16384
        $region56: #{discriminator_forward.1} parent=51 // pred_fallthru
          _
        // Predicated region
        $region57: #{discriminator_forward.1} parent=51 // pred_check
          %p297 = pneg %p168
        $region58: #{discriminator_forward.1} parent=51 // pred_check_branch
          %299 = sbr.rel (%p297) target = $region60
        $region59: #{discriminator_forward.1} parent=51 // pred_region
          %301 = dma.done [#allocation5], 16384
        $region60: #{discriminator_forward.1} parent=51 // pred_fallthru
          _
        %p302 = scmp.lt.s32.totalorder %s21, 1
        %s303 = scalar_select %p302, %s21, 1
        %s304 = smul.addr %s303, 4
        %s305 = smul.addr %s304, 4
        %s306 = scalar_lea.vmem %s0, %s305
        %p307 = pneg %p42
        %p308 = pneg %p39
        %p309 = pneg %p63
        %p310 = pneg %p60
        %p311 = pneg %p84
        %p312 = pneg %p81
        %p313 = pneg %p105
        %p314 = pneg %p102
        %p315 = pneg %p126
        %p316 = pneg %p123
        %p317 = pneg %p147
        %p318 = pneg %p144
        %p319 = pneg %p168
        %p320 = pneg %p165
        %p321 = pneg %p189
        %p322 = pneg %p186
        %p323 = pneg %p215
        %p324 = pneg %p212
        %p325 = scmp.lt.s32.totalorder %s21, 1
        %s326 = scalar_select %p325, %s21, 1
        %s327 = scalar_lea.vmem %s8, %s326
        %p328 = scmp.lt.s32.totalorder %s21, 1
        %s329 = scalar_select %p328, %s21, 1
        %s330 = smul.addr %s329, 4
        %s331 = smul.addr %s330, 4
        %s332 = scalar_lea.vmem %s0, %s331
        %p333 = scmp.lt.s32.totalorder %s21, 1
        %s334 = scalar_select %p333, %s21, 1
        %s335 = scalar_lea.vmem %s8, %s334
        %v337 = vld [vmem:[%s332] sm:$0xf]
        %v338 = vld [vmem:[%s332 + $0x4] sm:$0xf]
        %v339 = vld [vmem:[%s332 + $0x8] sm:$0xf]
        %v340 = vld [vmem:[%s332 + $0xc] sm:$0xf]
        %v341 = vld [vmem:[%s1] sm:$0xf]
        %v342 = vld [vmem:[%s1 + $0x4] sm:$0xf]
        %v345 = vunpack.c.l.b16 %v341
        %v346 = vunpack.c.l.b16 %v342
        %v347 = vpack.c.b16 %v346, %v345
        %v352 = vunpack.c.l.b16 %v337
        %v353 = vunpack.c.l.b16 %v338
        %v354 = vunpack.c.l.b16 %v339
        %v355 = vunpack.c.l.b16 %v340
        %v356 = vpack.c.b16 %v353, %v352
        %v357 = vpack.c.b16 %v355, %v354
        %vm360 = vcmask 261120
        %v362 = vsel %vm360, %v347, 0
        %364 = vmatpush.bf16.msra.mxu0 0
        %365 = vmatpush.bf16.msra.mxu0 0
        %366 = vmatpush.bf16.msra.mxu0 0
        %367 = vmatpush.bf16.msra.mxu0 0
        %368 = vmatpush.bf16.msra.mxu0 0
        %369 = vmatpush.bf16.msra.mxu0 0
        %370 = vmatpush.bf16.msra.mxu0 %v357
        %371 = vmatpush.bf16.msra.mxu0 %v356
        %372 = vmatmul.bf16.gmra.mxu0 %v362
        %v373 = vpop.f32.mrf.mxu0
        %v374 = vadd.f32 0.0, %v373
        %v375 = vpop.f32.mrf.mxu0
        %v376 = vadd.f32 0.0, %v375
        %377 = vdwg.mxu0
        %v378 = vpack.c.bf16 %v376, %v374
        %v379 = vld [vmem:[%s2] sm:$0xff]
        %v380 = vld [vmem:[%s2 + $0x8] sm:$0xff]
        %v381 = vld [vmem:[%s2 + $0x10] sm:$0xff]
        %v382 = vld [vmem:[%s2 + $0x18] sm:$0xff]
        %v383 = vld [vmem:[%s2 + $0x20] sm:$0xff]
        %v384 = vld [vmem:[%s2 + $0x28] sm:$0xff]
        %v385 = vld [vmem:[%s2 + $0x30] sm:$0xff]
        %v386 = vld [vmem:[%s2 + $0x38] sm:$0xff]
        %v387 = vld [vmem:[%s2 + $0x40] sm:$0xff]
        %v388 = vld [vmem:[%s2 + $0x48] sm:$0xff]
        %v389 = vld [vmem:[%s2 + $0x50] sm:$0xff]
        %v390 = vld [vmem:[%s2 + $0x58] sm:$0xff]
        %s391 = scalar_lea.vmem %s1, 8
        %v392 = vld [vmem:[%s391] sm:$0xf]
        %v393 = vld [vmem:[%s391 + $0x4] sm:$0xf]
        %v396 = vunpack.c.l.b16 %v392
        %v397 = vunpack.c.l.b16 %v393
        %v398 = vpack.c.b16 %v397, %v396
        %v400 = vsel %vm360, %v398, 0
        %402 = vmatpush.bf16.msra.mxu0 0
        %403 = vmatpush.bf16.msra.mxu0 0
        %404 = vmatpush.bf16.msra.mxu0 0
        %405 = vmatpush.bf16.msra.mxu0 0
        %406 = vmatpush.bf16.msra.mxu0 0
        %407 = vmatpush.bf16.msra.mxu0 0
        %408 = vmatpush.bf16.msra.mxu0 %v357
        %409 = vmatpush.bf16.msra.mxu0 %v356
        %410 = vmatmul.bf16.gmra.mxu0 %v400
        %v411 = vpop.f32.mrf.mxu0
        %v412 = vadd.f32 0.0, %v411
        %v413 = vpop.f32.mrf.mxu0
        %v414 = vadd.f32 0.0, %v413
        %415 = vdwg.mxu0
        %v416 = vpack.c.bf16 %v414, %v412
        %s417 = scalar_lea.vmem %s2, 96
        %v418 = vld [vmem:[%s417] sm:$0xff]
        %v419 = vld [vmem:[%s417 + $0x8] sm:$0xff]
        %v420 = vld [vmem:[%s417 + $0x10] sm:$0xff]
        %v421 = vld [vmem:[%s417 + $0x18] sm:$0xff]
        %v422 = vld [vmem:[%s417 + $0x20] sm:$0xff]
        %v423 = vld [vmem:[%s417 + $0x28] sm:$0xff]
        %v424 = vld [vmem:[%s417 + $0x30] sm:$0xff]
        %v425 = vld [vmem:[%s417 + $0x38] sm:$0xff]
        %v426 = vld [vmem:[%s417 + $0x40] sm:$0xff]
        %v427 = vld [vmem:[%s417 + $0x48] sm:$0xff]
        %v428 = vld [vmem:[%s417 + $0x50] sm:$0xff]
        %v429 = vld [vmem:[%s417 + $0x58] sm:$0xff]
        %v442 = vunpack.c.l.b16 %v418
        %v443 = vunpack.c.h.b16 %v418
        %v444 = vunpack.c.l.b16 %v419
        %v445 = vunpack.c.h.b16 %v419
        %v446 = vunpack.c.l.b16 %v420
        %v447 = vunpack.c.h.b16 %v420
        %v448 = vunpack.c.l.b16 %v421
        %v449 = vunpack.c.h.b16 %v421
        %v450 = vunpack.c.l.b16 %v422
        %v451 = vunpack.c.h.b16 %v422
        %v452 = vunpack.c.l.b16 %v423
        %v453 = vunpack.c.h.b16 %v423
        %v454 = vunpack.c.l.b16 %v424
        %v455 = vunpack.c.h.b16 %v424
        %v456 = vunpack.c.l.b16 %v425
        %v457 = vunpack.c.h.b16 %v425
        %v458 = vunpack.c.l.b16 %v426
        %v459 = vunpack.c.h.b16 %v426
        %v460 = vunpack.c.l.b16 %v427
        %v461 = vunpack.c.h.b16 %v427
        %v462 = vunpack.c.l.b16 %v428
        %v463 = vunpack.c.h.b16 %v428
        %v464 = vunpack.c.l.b16 %v429
        %v465 = vunpack.c.h.b16 %v429
        %v466 = vpack.c.b16 %v444, %v442
        %v467 = vpack.c.b16 %v445, %v443
        %v468 = vpack.c.b16 %v448, %v446
        %v469 = vpack.c.b16 %v449, %v447
        %v470 = vpack.c.b16 %v452, %v450
        %v471 = vpack.c.b16 %v453, %v451
        %v472 = vpack.c.b16 %v456, %v454
        %v473 = vpack.c.b16 %v457, %v455
        %v474 = vpack.c.b16 %v460, %v458
        %v475 = vpack.c.b16 %v461, %v459
        %v476 = vpack.c.b16 %v464, %v462
        %v477 = vpack.c.b16 %v465, %v463
        %vm490 = vcmask 785408
        %v492 = vsel %vm490, %v416, 0
        %494 = vmatpush.bf16.msra.mxu0 0
        %495 = vmatpush.bf16.msra.mxu0 0
        %496 = vmatpush.bf16.msra.mxu0 %v476
        %497 = vmatpush.bf16.msra.mxu0 %v474
        %498 = vmatpush.bf16.msra.mxu0 %v472
        %499 = vmatpush.bf16.msra.mxu0 %v470
        %500 = vmatpush.bf16.msra.mxu0 %v468
        %501 = vmatpush.bf16.msra.mxu0 %v466
        %502 = vmatmul.bf16.gmra.mxu0 %v492
        %v503 = vpop.f32.mrf.mxu0
        %v504 = vadd.f32 0.0, %v503
        %v505 = vpop.f32.mrf.mxu0
        %v506 = vadd.f32 0.0, %v505
        %507 = vdwg.mxu0
        %508 = vmatpush.bf16.msra.mxu0 0
        %509 = vmatpush.bf16.msra.mxu0 0
        %510 = vmatpush.bf16.msra.mxu0 %v477
        %511 = vmatpush.bf16.msra.mxu0 %v475
        %512 = vmatpush.bf16.msra.mxu0 %v473
        %513 = vmatpush.bf16.msra.mxu0 %v471
        %514 = vmatpush.bf16.msra.mxu0 %v469
        %515 = vmatpush.bf16.msra.mxu0 %v467
        %516 = vmatmul.bf16.gmra.mxu0 %v492
        %v517 = vpop.f32.mrf.mxu0
        %v518 = vadd.f32 0.0, %v517
        %v519 = vpop.f32.mrf.mxu0
        %v520 = vadd.f32 0.0, %v519
        %521 = vdwg.mxu0
        %v534 = vunpack.c.l.b16 %v379
        %v535 = vunpack.c.h.b16 %v379
        %v536 = vunpack.c.l.b16 %v380
        %v537 = vunpack.c.h.b16 %v380
        %v538 = vunpack.c.l.b16 %v381
        %v539 = vunpack.c.h.b16 %v381
        %v540 = vunpack.c.l.b16 %v382
        %v541 = vunpack.c.h.b16 %v382
        %v542 = vunpack.c.l.b16 %v383
        %v543 = vunpack.c.h.b16 %v383
        %v544 = vunpack.c.l.b16 %v384
        %v545 = vunpack.c.h.b16 %v384
        %v546 = vunpack.c.l.b16 %v385
        %v547 = vunpack.c.h.b16 %v385
        %v548 = vunpack.c.l.b16 %v386
        %v549 = vunpack.c.h.b16 %v386
        %v550 = vunpack.c.l.b16 %v387
        %v551 = vunpack.c.h.b16 %v387
        %v552 = vunpack.c.l.b16 %v388
        %v553 = vunpack.c.h.b16 %v388
        %v554 = vunpack.c.l.b16 %v389
        %v555 = vunpack.c.h.b16 %v389
        %v556 = vunpack.c.l.b16 %v390
        %v557 = vunpack.c.h.b16 %v390
        %v558 = vpack.c.b16 %v536, %v534
        %v559 = vpack.c.b16 %v537, %v535
        %v560 = vpack.c.b16 %v540, %v538
        %v561 = vpack.c.b16 %v541, %v539
        %v562 = vpack.c.b16 %v544, %v542
        %v563 = vpack.c.b16 %v545, %v543
        %v564 = vpack.c.b16 %v548, %v546
        %v565 = vpack.c.b16 %v549, %v547
        %v566 = vpack.c.b16 %v552, %v550
        %v567 = vpack.c.b16 %v553, %v551
        %v568 = vpack.c.b16 %v556, %v554
        %v569 = vpack.c.b16 %v557, %v555
        %v583 = vsel %vm490, %v378, 0
        %585 = vmatpush.bf16.msra.mxu0 0
        %586 = vmatpush.bf16.msra.mxu0 0
        %587 = vmatpush.bf16.msra.mxu0 %v568
        %588 = vmatpush.bf16.msra.mxu0 %v566
        %589 = vmatpush.bf16.msra.mxu0 %v564
        %590 = vmatpush.bf16.msra.mxu0 %v562
        %591 = vmatpush.bf16.msra.mxu0 %v560
        %592 = vmatpush.bf16.msra.mxu0 %v558
        %593 = vmatmul.bf16.gmra.mxu0 %v583
        %v594 = vpop.f32.mrf.mxu0
        %v595 = vadd.f32 %v504, %v594
        %v596 = vpop.f32.mrf.mxu0
        %v597 = vadd.f32 %v506, %v596
        %598 = vdwg.mxu0
        %599 = vmatpush.bf16.msra.mxu0 0
        %600 = vmatpush.bf16.msra.mxu0 0
        %601 = vmatpush.bf16.msra.mxu0 %v569
        %602 = vmatpush.bf16.msra.mxu0 %v567
        %603 = vmatpush.bf16.msra.mxu0 %v565
        %604 = vmatpush.bf16.msra.mxu0 %v563
        %605 = vmatpush.bf16.msra.mxu0 %v561
        %606 = vmatpush.bf16.msra.mxu0 %v559
        %607 = vmatmul.bf16.gmra.mxu0 %v583
        %v608 = vpop.f32.mrf.mxu0
        %v609 = vadd.f32 %v518, %v608
        %v610 = vpop.f32.mrf.mxu0
        %v611 = vadd.f32 %v520, %v610
        %612 = vdwg.mxu0
        %s613 = scalar_lea.vmem %s1, 16
        %v614 = vld [vmem:[%s613] sm:$0xf]
        %v615 = vld [vmem:[%s613 + $0x4] sm:$0xf]
        %v618 = vunpack.c.l.b16 %v614
        %v619 = vunpack.c.l.b16 %v615
        %v620 = vpack.c.b16 %v619, %v618
        %v622 = vsel %vm360, %v620, 0
        %624 = vmatpush.bf16.msra.mxu0 0
        %625 = vmatpush.bf16.msra.mxu0 0
        %626 = vmatpush.bf16.msra.mxu0 0
        %627 = vmatpush.bf16.msra.mxu0 0
        %628 = vmatpush.bf16.msra.mxu0 0
        %629 = vmatpush.bf16.msra.mxu0 0
        %630 = vmatpush.bf16.msra.mxu0 %v357
        %631 = vmatpush.bf16.msra.mxu0 %v356
        %632 = vmatmul.bf16.gmra.mxu0 %v622
        %v633 = vpop.f32.mrf.mxu0
        %v634 = vadd.f32 0.0, %v633
        %v635 = vpop.f32.mrf.mxu0
        %v636 = vadd.f32 0.0, %v635
        %637 = vdwg.mxu0
        %v638 = vpack.c.bf16 %v636, %v634
        %s639 = scalar_lea.vmem %s2, 192
        %v640 = vld [vmem:[%s639] sm:$0xff]
        %v641 = vld [vmem:[%s639 + $0x8] sm:$0xff]
        %v642 = vld [vmem:[%s639 + $0x10] sm:$0xff]
        %v643 = vld [vmem:[%s639 + $0x18] sm:$0xff]
        %v644 = vld [vmem:[%s639 + $0x20] sm:$0xff]
        %v645 = vld [vmem:[%s639 + $0x28] sm:$0xff]
        %v646 = vld [vmem:[%s639 + $0x30] sm:$0xff]
        %v647 = vld [vmem:[%s639 + $0x38] sm:$0xff]
        %v648 = vld [vmem:[%s639 + $0x40] sm:$0xff]
        %v649 = vld [vmem:[%s639 + $0x48] sm:$0xff]
        %v650 = vld [vmem:[%s639 + $0x50] sm:$0xff]
        %v651 = vld [vmem:[%s639 + $0x58] sm:$0xff]
        %v664 = vunpack.c.l.b16 %v640
        %v665 = vunpack.c.h.b16 %v640
        %v666 = vunpack.c.l.b16 %v641
        %v667 = vunpack.c.h.b16 %v641
        %v668 = vunpack.c.l.b16 %v642
        %v669 = vunpack.c.h.b16 %v642
        %v670 = vunpack.c.l.b16 %v643
        %v671 = vunpack.c.h.b16 %v643
        %v672 = vunpack.c.l.b16 %v644
        %v673 = vunpack.c.h.b16 %v644
        %v674 = vunpack.c.l.b16 %v645
        %v675 = vunpack.c.h.b16 %v645
        %v676 = vunpack.c.l.b16 %v646
        %v677 = vunpack.c.h.b16 %v646
        %v678 = vunpack.c.l.b16 %v647
        %v679 = vunpack.c.h.b16 %v647
        %v680 = vunpack.c.l.b16 %v648
        %v681 = vunpack.c.h.b16 %v648
        %v682 = vunpack.c.l.b16 %v649
        %v683 = vunpack.c.h.b16 %v649
        %v684 = vunpack.c.l.b16 %v650
        %v685 = vunpack.c.h.b16 %v650
        %v686 = vunpack.c.l.b16 %v651
        %v687 = vunpack.c.h.b16 %v651
        %v688 = vpack.c.b16 %v666, %v664
        %v689 = vpack.c.b16 %v667, %v665
        %v690 = vpack.c.b16 %v670, %v668
        %v691 = vpack.c.b16 %v671, %v669
        %v692 = vpack.c.b16 %v674, %v672
        %v693 = vpack.c.b16 %v675, %v673
        %v694 = vpack.c.b16 %v678, %v676
        %v695 = vpack.c.b16 %v679, %v677
        %v696 = vpack.c.b16 %v682, %v680
        %v697 = vpack.c.b16 %v683, %v681
        %v698 = vpack.c.b16 %v686, %v684
        %v699 = vpack.c.b16 %v687, %v685
        %v713 = vsel %vm490, %v638, 0
        %715 = vmatpush.bf16.msra.mxu0 0
        %716 = vmatpush.bf16.msra.mxu0 0
        %717 = vmatpush.bf16.msra.mxu0 %v698
        %718 = vmatpush.bf16.msra.mxu0 %v696
        %719 = vmatpush.bf16.msra.mxu0 %v694
        %720 = vmatpush.bf16.msra.mxu0 %v692
        %721 = vmatpush.bf16.msra.mxu0 %v690
        %722 = vmatpush.bf16.msra.mxu0 %v688
        %723 = vmatmul.bf16.gmra.mxu0 %v713
        %v724 = vpop.f32.mrf.mxu0
        %v725 = vadd.f32 0.0, %v724
        %v726 = vpop.f32.mrf.mxu0
        %v727 = vadd.f32 0.0, %v726
        %728 = vdwg.mxu0
        %729 = vmatpush.bf16.msra.mxu0 0
        %730 = vmatpush.bf16.msra.mxu0 0
        %731 = vmatpush.bf16.msra.mxu0 %v699
        %732 = vmatpush.bf16.msra.mxu0 %v697
        %733 = vmatpush.bf16.msra.mxu0 %v695
        %734 = vmatpush.bf16.msra.mxu0 %v693
        %735 = vmatpush.bf16.msra.mxu0 %v691
        %736 = vmatpush.bf16.msra.mxu0 %v689
        %737 = vmatmul.bf16.gmra.mxu0 %v713
        %v738 = vpop.f32.mrf.mxu0
        %v739 = vadd.f32 0.0, %v738
        %v740 = vpop.f32.mrf.mxu0
        %v741 = vadd.f32 0.0, %v740
        %742 = vdwg.mxu0
        %v743 = vadd.f32 %v595, %v725
        %v744 = vadd.f32 %v609, %v739
        %v745 = vadd.f32 %v597, %v727
        %v746 = vadd.f32 %v611, %v741
        %s747 = scalar_lea.vmem %s1, 24
        %v748 = vld [vmem:[%s747] sm:$0xf]
        %v749 = vld [vmem:[%s747 + $0x4] sm:$0xf]
        %v752 = vunpack.c.l.b16 %v748
        %v753 = vunpack.c.l.b16 %v749
        %v754 = vpack.c.b16 %v753, %v752
        %v756 = vsel %vm360, %v754, 0
        %758 = vmatpush.bf16.msra.mxu0 0
        %759 = vmatpush.bf16.msra.mxu0 0
        %760 = vmatpush.bf16.msra.mxu0 0
        %761 = vmatpush.bf16.msra.mxu0 0
        %762 = vmatpush.bf16.msra.mxu0 0
        %763 = vmatpush.bf16.msra.mxu0 0
        %764 = vmatpush.bf16.msra.mxu0 %v357
        %765 = vmatpush.bf16.msra.mxu0 %v356
        %766 = vmatmul.bf16.gmra.mxu0 %v756
        %v767 = vpop.f32.mrf.mxu0
        %v768 = vadd.f32 0.0, %v767
        %v769 = vpop.f32.mrf.mxu0
        %v770 = vadd.f32 0.0, %v769
        %771 = vdwg.mxu0
        %v772 = vpack.c.bf16 %v770, %v768
        %s773 = scalar_lea.vmem %s2, 288
        %v774 = vld [vmem:[%s773] sm:$0xff]
        %v775 = vld [vmem:[%s773 + $0x8] sm:$0xff]
        %v776 = vld [vmem:[%s773 + $0x10] sm:$0xff]
        %v777 = vld [vmem:[%s773 + $0x18] sm:$0xff]
        %v778 = vld [vmem:[%s773 + $0x20] sm:$0xff]
        %v779 = vld [vmem:[%s773 + $0x28] sm:$0xff]
        %v780 = vld [vmem:[%s773 + $0x30] sm:$0xff]
        %v781 = vld [vmem:[%s773 + $0x38] sm:$0xff]
        %v782 = vld [vmem:[%s773 + $0x40] sm:$0xff]
        %v783 = vld [vmem:[%s773 + $0x48] sm:$0xff]
        %v784 = vld [vmem:[%s773 + $0x50] sm:$0xff]
        %v785 = vld [vmem:[%s773 + $0x58] sm:$0xff]
        %v798 = vunpack.c.l.b16 %v774
        %v799 = vunpack.c.h.b16 %v774
        %v800 = vunpack.c.l.b16 %v775
        %v801 = vunpack.c.h.b16 %v775
        %v802 = vunpack.c.l.b16 %v776
        %v803 = vunpack.c.h.b16 %v776
        %v804 = vunpack.c.l.b16 %v777
        %v805 = vunpack.c.h.b16 %v777
        %v806 = vunpack.c.l.b16 %v778
        %v807 = vunpack.c.h.b16 %v778
        %v808 = vunpack.c.l.b16 %v779
        %v809 = vunpack.c.h.b16 %v779
        %v810 = vunpack.c.l.b16 %v780
        %v811 = vunpack.c.h.b16 %v780
        %v812 = vunpack.c.l.b16 %v781
        %v813 = vunpack.c.h.b16 %v781
        %v814 = vunpack.c.l.b16 %v782
        %v815 = vunpack.c.h.b16 %v782
        %v816 = vunpack.c.l.b16 %v783
        %v817 = vunpack.c.h.b16 %v783
        %v818 = vunpack.c.l.b16 %v784
        %v819 = vunpack.c.h.b16 %v784
        %v820 = vunpack.c.l.b16 %v785
        %v821 = vunpack.c.h.b16 %v785
        %v822 = vpack.c.b16 %v800, %v798
        %v823 = vpack.c.b16 %v801, %v799
        %v824 = vpack.c.b16 %v804, %v802
        %v825 = vpack.c.b16 %v805, %v803
        %v826 = vpack.c.b16 %v808, %v806
        %v827 = vpack.c.b16 %v809, %v807
        %v828 = vpack.c.b16 %v812, %v810
        %v829 = vpack.c.b16 %v813, %v811
        %v830 = vpack.c.b16 %v816, %v814
        %v831 = vpack.c.b16 %v817, %v815
        %v832 = vpack.c.b16 %v820, %v818
        %v833 = vpack.c.b16 %v821, %v819
        %v847 = vsel %vm490, %v772, 0
        %849 = vmatpush.bf16.msra.mxu0 0
        %850 = vmatpush.bf16.msra.mxu0 0
        %851 = vmatpush.bf16.msra.mxu0 %v832
        %852 = vmatpush.bf16.msra.mxu0 %v830
        %853 = vmatpush.bf16.msra.mxu0 %v828
        %854 = vmatpush.bf16.msra.mxu0 %v826
        %855 = vmatpush.bf16.msra.mxu0 %v824
        %856 = vmatpush.bf16.msra.mxu0 %v822
        %857 = vmatmul.bf16.gmra.mxu0 %v847
        %v858 = vpop.f32.mrf.mxu0
        %v859 = vadd.f32 0.0, %v858
        %v860 = vpop.f32.mrf.mxu0
        %v861 = vadd.f32 0.0, %v860
        %862 = vdwg.mxu0
        %863 = vmatpush.bf16.msra.mxu0 0
        %864 = vmatpush.bf16.msra.mxu0 0
        %865 = vmatpush.bf16.msra.mxu0 %v833
        %866 = vmatpush.bf16.msra.mxu0 %v831
        %867 = vmatpush.bf16.msra.mxu0 %v829
        %868 = vmatpush.bf16.msra.mxu0 %v827
        %869 = vmatpush.bf16.msra.mxu0 %v825
        %870 = vmatpush.bf16.msra.mxu0 %v823
        %871 = vmatmul.bf16.gmra.mxu0 %v847
        %v872 = vpop.f32.mrf.mxu0
        %v873 = vadd.f32 0.0, %v872
        %v874 = vpop.f32.mrf.mxu0
        %v875 = vadd.f32 0.0, %v874
        %876 = vdwg.mxu0
        %v877 = vadd.f32 %v743, %v859
        %v878 = vadd.f32 %v744, %v873
        %v879 = vadd.f32 %v745, %v861
        %v880 = vadd.f32 %v746, %v875
        %vm881 = vcmp.gt.f32.partialorder %v877, 0.0
        %vm882 = vcmp.gt.f32.partialorder %v878, 0.0
        %vm883 = vcmp.gt.f32.partialorder %v879, 0.0
        %vm884 = vcmp.gt.f32.partialorder %v880, 0.0
        %v885 = vmul.f32 %v877, 0.2
        %v886 = vmul.f32 %v878, 0.2
        %v887 = vmul.f32 %v879, 0.2
        %v888 = vmul.f32 %v880, 0.2
        %v889 = vsel %vm881, %v877, %v885
        %v890 = vsel %vm882, %v878, %v886
        %v891 = vsel %vm883, %v879, %v887
        %v892 = vsel %vm884, %v880, %v888
        %v893 = vpack.c.bf16 %v891, %v889
        %v894 = vpack.c.bf16 %v892, %v890
        %v895 = vld [vmem:[%s3] sm:$0xf]
        %vm896 = vcmask 130048
        %v898 = vsel %vm896, %v895, 0
        %900 = vmatpush.bf16.msra.mxu0 0
        %901 = vmatpush.bf16.msra.mxu0 0
        %902 = vmatpush.bf16.msra.mxu0 0
        %903 = vmatpush.bf16.msra.mxu0 0
        %904 = vmatpush.bf16.msra.mxu0 0
        %905 = vmatpush.bf16.msra.mxu0 0
        %906 = vmatpush.bf16.msra.mxu0 0
        %907 = vmatpush.bf16.msra.mxu0 %v893
        %908 = vmatmul.bf16.gmra.mxu0 %v898
        %v909 = vpop.f32.mrf.mxu0
        %v910 = vadd.f32 0.0, %v909
        %v911 = vpop.f32.mrf.mxu0
        %912 = vdwg.mxu0
        %913 = vmatpush.bf16.msra.mxu0 0
        %914 = vmatpush.bf16.msra.mxu0 0
        %915 = vmatpush.bf16.msra.mxu0 0
        %916 = vmatpush.bf16.msra.mxu0 0
        %917 = vmatpush.bf16.msra.mxu0 0
        %918 = vmatpush.bf16.msra.mxu0 0
        %919 = vmatpush.bf16.msra.mxu0 0
        %920 = vmatpush.bf16.msra.mxu0 %v894
        %921 = vmatmul.bf16.gmra.mxu0 %v898
        %v922 = vpop.f32.mrf.mxu0
        %v923 = vadd.f32 0.0, %v922
        %v924 = vpop.f32.mrf.mxu0
        %925 = vdwg.mxu0
        %v926 = vpack.c.bf16 %v910, %v910
        %v927 = vpack.c.bf16 %v923, %v923
        %v928 = vld [vmem:[#allocation2] sm:$0xff]
        %v929 = vld [vmem:[#allocation2 + $0x8] sm:$0xff]
        %v930 = vld [vmem:[#allocation2 + $0x10] sm:$0xff]
        %v931 = vld [vmem:[#allocation2 + $0x18] sm:$0xff]
        %v932 = vld [vmem:[#allocation2 + $0x20] sm:$0xff]
        %v933 = vld [vmem:[#allocation2 + $0x28] sm:$0xff]
        %v934 = vld [vmem:[#allocation2 + $0x30] sm:$0xff]
        %v935 = vld [vmem:[#allocation2 + $0x38] sm:$0xff]
        %v936 = vld [vmem:[#allocation2 + $0x40] sm:$0xff]
        %v937 = vld [vmem:[#allocation2 + $0x48] sm:$0xff]
        %v938 = vld [vmem:[#allocation2 + $0x50] sm:$0xff]
        %v939 = vld [vmem:[#allocation2 + $0x58] sm:$0xff]
        %v940 = vld [vmem:[#allocation2 + $0x60] sm:$0xff]
        %v941 = vld [vmem:[#allocation2 + $0x68] sm:$0xff]
        %v942 = vld [vmem:[#allocation2 + $0x70] sm:$0xff]
        %v943 = vld [vmem:[#allocation2 + $0x78] sm:$0xff]
        %v944 = vld [vmem:[#allocation2 + $0x80] sm:$0xff]
        %v945 = vld [vmem:[#allocation2 + $0x88] sm:$0xff]
        %v946 = vld [vmem:[#allocation2 + $0x90] sm:$0xff]
        %v947 = vld [vmem:[#allocation2 + $0x98] sm:$0xff]
        %v948 = vld [vmem:[#allocation2 + $0xa0] sm:$0xff]
        %v949 = vld [vmem:[#allocation2 + $0xa8] sm:$0xff]
        %v950 = vld [vmem:[#allocation2 + $0xb0] sm:$0xff]
        %v951 = vld [vmem:[#allocation2 + $0xb8] sm:$0xff]
        %v952 = vld [vmem:[#allocation2 + $0xc0] sm:$0xff]
        %v953 = vld [vmem:[#allocation2 + $0xc8] sm:$0xff]
        %v954 = vld [vmem:[#allocation2 + $0xd0] sm:$0xff]
        %v955 = vld [vmem:[#allocation2 + $0xd8] sm:$0xff]
        %v956 = vld [vmem:[#allocation2 + $0xe0] sm:$0xff]
        %v957 = vld [vmem:[#allocation2 + $0xe8] sm:$0xff]
        %v958 = vld [vmem:[#allocation2 + $0xf0] sm:$0xff]
        %v959 = vld [vmem:[#allocation2 + $0xf8] sm:$0xff]
        %s960 = scalar_lea.vmem %s3, 4
        %v961 = vld [vmem:[%s960] sm:$0xf]
        %v963 = vsel %vm896, %v961, 0
        %965 = vmatpush.bf16.msra.mxu0 0
        %966 = vmatpush.bf16.msra.mxu0 0
        %967 = vmatpush.bf16.msra.mxu0 0
        %968 = vmatpush.bf16.msra.mxu0 0
        %969 = vmatpush.bf16.msra.mxu0 0
        %970 = vmatpush.bf16.msra.mxu0 0
        %971 = vmatpush.bf16.msra.mxu0 0
        %972 = vmatpush.bf16.msra.mxu0 %v893
        %973 = vmatmul.bf16.gmra.mxu0 %v963
        %v974 = vpop.f32.mrf.mxu0
        %v975 = vadd.f32 0.0, %v974
        %v976 = vpop.f32.mrf.mxu0
        %977 = vdwg.mxu0
        %978 = vmatpush.bf16.msra.mxu0 0
        %979 = vmatpush.bf16.msra.mxu0 0
        %980 = vmatpush.bf16.msra.mxu0 0
        %981 = vmatpush.bf16.msra.mxu0 0
        %982 = vmatpush.bf16.msra.mxu0 0
        %983 = vmatpush.bf16.msra.mxu0 0
        %984 = vmatpush.bf16.msra.mxu0 0
        %985 = vmatpush.bf16.msra.mxu0 %v894
        %986 = vmatmul.bf16.gmra.mxu0 %v963
        %v987 = vpop.f32.mrf.mxu0
        %v988 = vadd.f32 0.0, %v987
        %v989 = vpop.f32.mrf.mxu0
        %990 = vdwg.mxu0
        %v991 = vpack.c.bf16 %v975, %v975
        %v992 = vpack.c.bf16 %v988, %v988
        %s993 = scalar_lea.vmem [#allocation2], 256
        %v994 = vld [vmem:[%s993] sm:$0xff]
        %v995 = vld [vmem:[%s993 + $0x8] sm:$0xff]
        %v996 = vld [vmem:[%s993 + $0x10] sm:$0xff]
        %v997 = vld [vmem:[%s993 + $0x18] sm:$0xff]
        %v998 = vld [vmem:[%s993 + $0x20] sm:$0xff]
        %v999 = vld [vmem:[%s993 + $0x28] sm:$0xff]
        %v1000 = vld [vmem:[%s993 + $0x30] sm:$0xff]
        %v1001 = vld [vmem:[%s993 + $0x38] sm:$0xff]
        %v1002 = vld [vmem:[%s993 + $0x40] sm:$0xff]
        %v1003 = vld [vmem:[%s993 + $0x48] sm:$0xff]
        %v1004 = vld [vmem:[%s993 + $0x50] sm:$0xff]
        %v1005 = vld [vmem:[%s993 + $0x58] sm:$0xff]
        %v1006 = vld [vmem:[%s993 + $0x60] sm:$0xff]
        %v1007 = vld [vmem:[%s993 + $0x68] sm:$0xff]
        %v1008 = vld [vmem:[%s993 + $0x70] sm:$0xff]
        %v1009 = vld [vmem:[%s993 + $0x78] sm:$0xff]
        %v1010 = vld [vmem:[%s993 + $0x80] sm:$0xff]
        %v1011 = vld [vmem:[%s993 + $0x88] sm:$0xff]
        %v1012 = vld [vmem:[%s993 + $0x90] sm:$0xff]
        %v1013 = vld [vmem:[%s993 + $0x98] sm:$0xff]
        %v1014 = vld [vmem:[%s993 + $0xa0] sm:$0xff]
        %v1015 = vld [vmem:[%s993 + $0xa8] sm:$0xff]
        %v1016 = vld [vmem:[%s993 + $0xb0] sm:$0xff]
        %v1017 = vld [vmem:[%s993 + $0xb8] sm:$0xff]
        %v1018 = vld [vmem:[%s993 + $0xc0] sm:$0xff]
        %v1019 = vld [vmem:[%s993 + $0xc8] sm:$0xff]
        %v1020 = vld [vmem:[%s993 + $0xd0] sm:$0xff]
        %v1021 = vld [vmem:[%s993 + $0xd8] sm:$0xff]
        %v1022 = vld [vmem:[%s993 + $0xe0] sm:$0xff]
        %v1023 = vld [vmem:[%s993 + $0xe8] sm:$0xff]
        %v1024 = vld [vmem:[%s993 + $0xf0] sm:$0xff]
        %v1025 = vld [vmem:[%s993 + $0xf8] sm:$0xff]
        %v1058 = vunpack.c.l.b16 %v994
        %v1059 = vunpack.c.h.b16 %v994
        %v1060 = vunpack.c.l.b16 %v995
        %v1061 = vunpack.c.h.b16 %v995
        %v1062 = vunpack.c.l.b16 %v996
        %v1063 = vunpack.c.h.b16 %v996
        %v1064 = vunpack.c.l.b16 %v997
        %v1065 = vunpack.c.h.b16 %v997
        %v1066 = vunpack.c.l.b16 %v998
        %v1067 = vunpack.c.h.b16 %v998
        %v1068 = vunpack.c.l.b16 %v999
        %v1069 = vunpack.c.h.b16 %v999
        %v1070 = vunpack.c.l.b16 %v1000
        %v1071 = vunpack.c.h.b16 %v1000
        %v1072 = vunpack.c.l.b16 %v1001
        %v1073 = vunpack.c.h.b16 %v1001
        %v1074 = vunpack.c.l.b16 %v1002
        %v1075 = vunpack.c.h.b16 %v1002
        %v1076 = vunpack.c.l.b16 %v1003
        %v1077 = vunpack.c.h.b16 %v1003
        %v1078 = vunpack.c.l.b16 %v1004
        %v1079 = vunpack.c.h.b16 %v1004
        %v1080 = vunpack.c.l.b16 %v1005
        %v1081 = vunpack.c.h.b16 %v1005
        %v1082 = vunpack.c.l.b16 %v1006
        %v1083 = vunpack.c.h.b16 %v1006
        %v1084 = vunpack.c.l.b16 %v1007
        %v1085 = vunpack.c.h.b16 %v1007
        %v1086 = vunpack.c.l.b16 %v1008
        %v1087 = vunpack.c.h.b16 %v1008
        %v1088 = vunpack.c.l.b16 %v1009
        %v1089 = vunpack.c.h.b16 %v1009
        %v1090 = vunpack.c.l.b16 %v1010
        %v1091 = vunpack.c.h.b16 %v1010
        %v1092 = vunpack.c.l.b16 %v1011
        %v1093 = vunpack.c.h.b16 %v1011
        %v1094 = vunpack.c.l.b16 %v1012
        %v1095 = vunpack.c.h.b16 %v1012
        %v1096 = vunpack.c.l.b16 %v1013
        %v1097 = vunpack.c.h.b16 %v1013
        %v1098 = vunpack.c.l.b16 %v1014
        %v1099 = vunpack.c.h.b16 %v1014
        %v1100 = vunpack.c.l.b16 %v1015
        %v1101 = vunpack.c.h.b16 %v1015
        %v1102 = vunpack.c.l.b16 %v1016
        %v1103 = vunpack.c.h.b16 %v1016
        %v1104 = vunpack.c.l.b16 %v1017
        %v1105 = vunpack.c.h.b16 %v1017
        %v1106 = vunpack.c.l.b16 %v1018
        %v1107 = vunpack.c.h.b16 %v1018
        %v1108 = vunpack.c.l.b16 %v1019
        %v1109 = vunpack.c.h.b16 %v1019
        %v1110 = vunpack.c.l.b16 %v1020
        %v1111 = vunpack.c.h.b16 %v1020
        %v1112 = vunpack.c.l.b16 %v1021
        %v1113 = vunpack.c.h.b16 %v1021
        %v1114 = vunpack.c.l.b16 %v1022
        %v1115 = vunpack.c.h.b16 %v1022
        %v1116 = vunpack.c.l.b16 %v1023
        %v1117 = vunpack.c.h.b16 %v1023
        %v1118 = vunpack.c.l.b16 %v1024
        %v1119 = vunpack.c.h.b16 %v1024
        %v1120 = vunpack.c.l.b16 %v1025
        %v1121 = vunpack.c.h.b16 %v1025
        %v1122 = vpack.c.b16 %v1060, %v1058
        %v1123 = vpack.c.b16 %v1061, %v1059
        %v1124 = vpack.c.b16 %v1064, %v1062
        %v1125 = vpack.c.b16 %v1065, %v1063
        %v1126 = vpack.c.b16 %v1068, %v1066
        %v1127 = vpack.c.b16 %v1069, %v1067
        %v1128 = vpack.c.b16 %v1072, %v1070
        %v1129 = vpack.c.b16 %v1073, %v1071
        %v1130 = vpack.c.b16 %v1076, %v1074
        %v1131 = vpack.c.b16 %v1077, %v1075
        %v1132 = vpack.c.b16 %v1080, %v1078
        %v1133 = vpack.c.b16 %v1081, %v1079
        %v1134 = vpack.c.b16 %v1084, %v1082
        %v1135 = vpack.c.b16 %v1085, %v1083
        %v1136 = vpack.c.b16 %v1088, %v1086
        %v1137 = vpack.c.b16 %v1089, %v1087
        %v1138 = vpack.c.b16 %v1092, %v1090
        %v1139 = vpack.c.b16 %v1093, %v1091
        %v1140 = vpack.c.b16 %v1096, %v1094
        %v1141 = vpack.c.b16 %v1097, %v1095
        %v1142 = vpack.c.b16 %v1100, %v1098
        %v1143 = vpack.c.b16 %v1101, %v1099
        %v1144 = vpack.c.b16 %v1104, %v1102
        %v1145 = vpack.c.b16 %v1105, %v1103
        %v1146 = vpack.c.b16 %v1108, %v1106
        %v1147 = vpack.c.b16 %v1109, %v1107
        %v1148 = vpack.c.b16 %v1112, %v1110
        %v1149 = vpack.c.b16 %v1113, %v1111
        %v1150 = vpack.c.b16 %v1116, %v1114
        %v1151 = vpack.c.b16 %v1117, %v1115
        %v1152 = vpack.c.b16 %v1120, %v1118
        %v1153 = vpack.c.b16 %v1121, %v1119
        %1186 = vmatpush.bf16.msra.mxu0 %v1136
        %1187 = vmatpush.bf16.msra.mxu0 %v1134
        %1188 = vmatpush.bf16.msra.mxu0 %v1132
        %1189 = vmatpush.bf16.msra.mxu0 %v1130
        %1190 = vmatpush.bf16.msra.mxu0 %v1128
        %1191 = vmatpush.bf16.msra.mxu0 %v1126
        %1192 = vmatpush.bf16.msra.mxu0 %v1124
        %1193 = vmatpush.bf16.msra.mxu0 %v1122
        %1194 = vmatmul.bf16.gmra.mxu0 %v991
        %v1195 = vpop.f32.mrf.mxu0
        %v1196 = vadd.f32 0.0, %v1195
        %v1197 = vpop.f32.mrf.mxu0
        %1198 = vdwg.mxu0
        %1199 = vmatpush.bf16.msra.mxu0 %v1152
        %1200 = vmatpush.bf16.msra.mxu0 %v1150
        %1201 = vmatpush.bf16.msra.mxu0 %v1148
        %1202 = vmatpush.bf16.msra.mxu0 %v1146
        %1203 = vmatpush.bf16.msra.mxu0 %v1144
        %1204 = vmatpush.bf16.msra.mxu0 %v1142
        %1205 = vmatpush.bf16.msra.mxu0 %v1140
        %1206 = vmatpush.bf16.msra.mxu0 %v1138
        %1207 = vmatmul.bf16.gmra.mxu0 %v992
        %v1208 = vpop.f32.mrf.mxu0
        %v1209 = vadd.f32 %v1196, %v1208
        %v1210 = vpop.f32.mrf.mxu0
        %1211 = vdwg.mxu0
        %1212 = vmatpush.bf16.msra.mxu0 %v1137
        %1213 = vmatpush.bf16.msra.mxu0 %v1135
        %1214 = vmatpush.bf16.msra.mxu0 %v1133
        %1215 = vmatpush.bf16.msra.mxu0 %v1131
        %1216 = vmatpush.bf16.msra.mxu0 %v1129
        %1217 = vmatpush.bf16.msra.mxu0 %v1127
        %1218 = vmatpush.bf16.msra.mxu0 %v1125
        %1219 = vmatpush.bf16.msra.mxu0 %v1123
        %1220 = vmatmul.bf16.gmra.mxu0 %v991
        %v1221 = vpop.f32.mrf.mxu0
        %v1222 = vadd.f32 0.0, %v1221
        %v1223 = vpop.f32.mrf.mxu0
        %1224 = vdwg.mxu0
        %1225 = vmatpush.bf16.msra.mxu0 %v1153
        %1226 = vmatpush.bf16.msra.mxu0 %v1151
        %1227 = vmatpush.bf16.msra.mxu0 %v1149
        %1228 = vmatpush.bf16.msra.mxu0 %v1147
        %1229 = vmatpush.bf16.msra.mxu0 %v1145
        %1230 = vmatpush.bf16.msra.mxu0 %v1143
        %1231 = vmatpush.bf16.msra.mxu0 %v1141
        %1232 = vmatpush.bf16.msra.mxu0 %v1139
        %1233 = vmatmul.bf16.gmra.mxu0 %v992
        %v1234 = vpop.f32.mrf.mxu0
        %v1235 = vadd.f32 %v1222, %v1234
        %v1236 = vpop.f32.mrf.mxu0
        %1237 = vdwg.mxu0
        %v1270 = vunpack.c.l.b16 %v928
        %v1271 = vunpack.c.h.b16 %v928
        %v1272 = vunpack.c.l.b16 %v929
        %v1273 = vunpack.c.h.b16 %v929
        %v1274 = vunpack.c.l.b16 %v930
        %v1275 = vunpack.c.h.b16 %v930
        %v1276 = vunpack.c.l.b16 %v931
        %v1277 = vunpack.c.h.b16 %v931
        %v1278 = vunpack.c.l.b16 %v932
        %v1279 = vunpack.c.h.b16 %v932
        %v1280 = vunpack.c.l.b16 %v933
        %v1281 = vunpack.c.h.b16 %v933
        %v1282 = vunpack.c.l.b16 %v934
        %v1283 = vunpack.c.h.b16 %v934
        %v1284 = vunpack.c.l.b16 %v935
        %v1285 = vunpack.c.h.b16 %v935
        %v1286 = vunpack.c.l.b16 %v936
        %v1287 = vunpack.c.h.b16 %v936
        %v1288 = vunpack.c.l.b16 %v937
        %v1289 = vunpack.c.h.b16 %v937
        %v1290 = vunpack.c.l.b16 %v938
        %v1291 = vunpack.c.h.b16 %v938
        %v1292 = vunpack.c.l.b16 %v939
        %v1293 = vunpack.c.h.b16 %v939
        %v1294 = vunpack.c.l.b16 %v940
        %v1295 = vunpack.c.h.b16 %v940
        %v1296 = vunpack.c.l.b16 %v941
        %v1297 = vunpack.c.h.b16 %v941
        %v1298 = vunpack.c.l.b16 %v942
        %v1299 = vunpack.c.h.b16 %v942
        %v1300 = vunpack.c.l.b16 %v943
        %v1301 = vunpack.c.h.b16 %v943
        %v1302 = vunpack.c.l.b16 %v944
        %v1303 = vunpack.c.h.b16 %v944
        %v1304 = vunpack.c.l.b16 %v945
        %v1305 = vunpack.c.h.b16 %v945
        %v1306 = vunpack.c.l.b16 %v946
        %v1307 = vunpack.c.h.b16 %v946
        %v1308 = vunpack.c.l.b16 %v947
        %v1309 = vunpack.c.h.b16 %v947
        %v1310 = vunpack.c.l.b16 %v948
        %v1311 = vunpack.c.h.b16 %v948
        %v1312 = vunpack.c.l.b16 %v949
        %v1313 = vunpack.c.h.b16 %v949
        %v1314 = vunpack.c.l.b16 %v950
        %v1315 = vunpack.c.h.b16 %v950
        %v1316 = vunpack.c.l.b16 %v951
        %v1317 = vunpack.c.h.b16 %v951
        %v1318 = vunpack.c.l.b16 %v952
        %v1319 = vunpack.c.h.b16 %v952
        %v1320 = vunpack.c.l.b16 %v953
        %v1321 = vunpack.c.h.b16 %v953
        %v1322 = vunpack.c.l.b16 %v954
        %v1323 = vunpack.c.h.b16 %v954
        %v1324 = vunpack.c.l.b16 %v955
        %v1325 = vunpack.c.h.b16 %v955
        %v1326 = vunpack.c.l.b16 %v956
        %v1327 = vunpack.c.h.b16 %v956
        %v1328 = vunpack.c.l.b16 %v957
        %v1329 = vunpack.c.h.b16 %v957
        %v1330 = vunpack.c.l.b16 %v958
        %v1331 = vunpack.c.h.b16 %v958
        %v1332 = vunpack.c.l.b16 %v959
        %v1333 = vunpack.c.h.b16 %v959
        %v1334 = vpack.c.b16 %v1272, %v1270
        %v1335 = vpack.c.b16 %v1273, %v1271
        %v1336 = vpack.c.b16 %v1276, %v1274
        %v1337 = vpack.c.b16 %v1277, %v1275
        %v1338 = vpack.c.b16 %v1280, %v1278
        %v1339 = vpack.c.b16 %v1281, %v1279
        %v1340 = vpack.c.b16 %v1284, %v1282
        %v1341 = vpack.c.b16 %v1285, %v1283
        %v1342 = vpack.c.b16 %v1288, %v1286
        %v1343 = vpack.c.b16 %v1289, %v1287
        %v1344 = vpack.c.b16 %v1292, %v1290
        %v1345 = vpack.c.b16 %v1293, %v1291
        %v1346 = vpack.c.b16 %v1296, %v1294
        %v1347 = vpack.c.b16 %v1297, %v1295
        %v1348 = vpack.c.b16 %v1300, %v1298
        %v1349 = vpack.c.b16 %v1301, %v1299
        %v1350 = vpack.c.b16 %v1304, %v1302
        %v1351 = vpack.c.b16 %v1305, %v1303
        %v1352 = vpack.c.b16 %v1308, %v1306
        %v1353 = vpack.c.b16 %v1309, %v1307
        %v1354 = vpack.c.b16 %v1312, %v1310
        %v1355 = vpack.c.b16 %v1313, %v1311
        %v1356 = vpack.c.b16 %v1316, %v1314
        %v1357 = vpack.c.b16 %v1317, %v1315
        %v1358 = vpack.c.b16 %v1320, %v1318
        %v1359 = vpack.c.b16 %v1321, %v1319
        %v1360 = vpack.c.b16 %v1324, %v1322
        %v1361 = vpack.c.b16 %v1325, %v1323
        %v1362 = vpack.c.b16 %v1328, %v1326
        %v1363 = vpack.c.b16 %v1329, %v1327
        %v1364 = vpack.c.b16 %v1332, %v1330
        %v1365 = vpack.c.b16 %v1333, %v1331
        %1398 = vmatpush.bf16.msra.mxu0 %v1348
        %1399 = vmatpush.bf16.msra.mxu0 %v1346
        %1400 = vmatpush.bf16.msra.mxu0 %v1344
        %1401 = vmatpush.bf16.msra.mxu0 %v1342
        %1402 = vmatpush.bf16.msra.mxu0 %v1340
        %1403 = vmatpush.bf16.msra.mxu0 %v1338
        %1404 = vmatpush.bf16.msra.mxu0 %v1336
        %1405 = vmatpush.bf16.msra.mxu0 %v1334
        %1406 = vmatmul.bf16.gmra.mxu0 %v926
        %v1407 = vpop.f32.mrf.mxu0
        %v1408 = vadd.f32 %v1209, %v1407
        %v1409 = vpop.f32.mrf.mxu0
        %1410 = vdwg.mxu0
        %1411 = vmatpush.bf16.msra.mxu0 %v1364
        %1412 = vmatpush.bf16.msra.mxu0 %v1362
        %1413 = vmatpush.bf16.msra.mxu0 %v1360
        %1414 = vmatpush.bf16.msra.mxu0 %v1358
        %1415 = vmatpush.bf16.msra.mxu0 %v1356
        %1416 = vmatpush.bf16.msra.mxu0 %v1354
        %1417 = vmatpush.bf16.msra.mxu0 %v1352
        %1418 = vmatpush.bf16.msra.mxu0 %v1350
        %1419 = vmatmul.bf16.gmra.mxu0 %v927
        %v1420 = vpop.f32.mrf.mxu0
        %v1421 = vadd.f32 %v1408, %v1420
        %v1422 = vpop.f32.mrf.mxu0
        %1423 = vdwg.mxu0
        %1424 = vmatpush.bf16.msra.mxu0 %v1349
        %1425 = vmatpush.bf16.msra.mxu0 %v1347
        %1426 = vmatpush.bf16.msra.mxu0 %v1345
        %1427 = vmatpush.bf16.msra.mxu0 %v1343
        %1428 = vmatpush.bf16.msra.mxu0 %v1341
        %1429 = vmatpush.bf16.msra.mxu0 %v1339
        %1430 = vmatpush.bf16.msra.mxu0 %v1337
        %1431 = vmatpush.bf16.msra.mxu0 %v1335
        %1432 = vmatmul.bf16.gmra.mxu0 %v926
        %v1433 = vpop.f32.mrf.mxu0
        %v1434 = vadd.f32 %v1235, %v1433
        %v1435 = vpop.f32.mrf.mxu0
        %1436 = vdwg.mxu0
        %1437 = vmatpush.bf16.msra.mxu0 %v1365
        %1438 = vmatpush.bf16.msra.mxu0 %v1363
        %1439 = vmatpush.bf16.msra.mxu0 %v1361
        %1440 = vmatpush.bf16.msra.mxu0 %v1359
        %1441 = vmatpush.bf16.msra.mxu0 %v1357
        %1442 = vmatpush.bf16.msra.mxu0 %v1355
        %1443 = vmatpush.bf16.msra.mxu0 %v1353
        %1444 = vmatpush.bf16.msra.mxu0 %v1351
        %1445 = vmatmul.bf16.gmra.mxu0 %v927
        %v1446 = vpop.f32.mrf.mxu0
        %v1447 = vadd.f32 %v1434, %v1446
        %v1448 = vpop.f32.mrf.mxu0
        %1449 = vdwg.mxu0
        %s1450 = scalar_lea.vmem %s3, 8
        %v1451 = vld [vmem:[%s1450] sm:$0xf]
        %v1453 = vsel %vm896, %v1451, 0
        %1455 = vmatpush.bf16.msra.mxu0 0
        %1456 = vmatpush.bf16.msra.mxu0 0
        %1457 = vmatpush.bf16.msra.mxu0 0
        %1458 = vmatpush.bf16.msra.mxu0 0
        %1459 = vmatpush.bf16.msra.mxu0 0
        %1460 = vmatpush.bf16.msra.mxu0 0
        %1461 = vmatpush.bf16.msra.mxu0 0
        %1462 = vmatpush.bf16.msra.mxu0 %v893
        %1463 = vmatmul.bf16.gmra.mxu0 %v1453
        %v1464 = vpop.f32.mrf.mxu0
        %v1465 = vadd.f32 0.0, %v1464
        %v1466 = vpop.f32.mrf.mxu0
        %1467 = vdwg.mxu0
        %1468 = vmatpush.bf16.msra.mxu0 0
        %1469 = vmatpush.bf16.msra.mxu0 0
        %1470 = vmatpush.bf16.msra.mxu0 0
        %1471 = vmatpush.bf16.msra.mxu0 0
        %1472 = vmatpush.bf16.msra.mxu0 0
        %1473 = vmatpush.bf16.msra.mxu0 0
        %1474 = vmatpush.bf16.msra.mxu0 0
        %1475 = vmatpush.bf16.msra.mxu0 %v894
        %1476 = vmatmul.bf16.gmra.mxu0 %v1453
        %v1477 = vpop.f32.mrf.mxu0
        %v1478 = vadd.f32 0.0, %v1477
        %v1479 = vpop.f32.mrf.mxu0
        %1480 = vdwg.mxu0
        %v1481 = vpack.c.bf16 %v1465, %v1465
        %v1482 = vpack.c.bf16 %v1478, %v1478
        %s1483 = scalar_lea.vmem [#allocation2], 512
        %v1484 = vld [vmem:[%s1483] sm:$0xff]
        %v1485 = vld [vmem:[%s1483 + $0x8] sm:$0xff]
        %v1486 = vld [vmem:[%s1483 + $0x10] sm:$0xff]
        %v1487 = vld [vmem:[%s1483 + $0x18] sm:$0xff]
        %v1488 = vld [vmem:[%s1483 + $0x20] sm:$0xff]
        %v1489 = vld [vmem:[%s1483 + $0x28] sm:$0xff]
        %v1490 = vld [vmem:[%s1483 + $0x30] sm:$0xff]
        %v1491 = vld [vmem:[%s1483 + $0x38] sm:$0xff]
        %v1492 = vld [vmem:[%s1483 + $0x40] sm:$0xff]
        %v1493 = vld [vmem:[%s1483 + $0x48] sm:$0xff]
        %v1494 = vld [vmem:[%s1483 + $0x50] sm:$0xff]
        %v1495 = vld [vmem:[%s1483 + $0x58] sm:$0xff]
        %v1496 = vld [vmem:[%s1483 + $0x60] sm:$0xff]
        %v1497 = vld [vmem:[%s1483 + $0x68] sm:$0xff]
        %v1498 = vld [vmem:[%s1483 + $0x70] sm:$0xff]
        %v1499 = vld [vmem:[%s1483 + $0x78] sm:$0xff]
        %v1500 = vld [vmem:[%s1483 + $0x80] sm:$0xff]
        %v1501 = vld [vmem:[%s1483 + $0x88] sm:$0xff]
        %v1502 = vld [vmem:[%s1483 + $0x90] sm:$0xff]
        %v1503 = vld [vmem:[%s1483 + $0x98] sm:$0xff]
        %v1504 = vld [vmem:[%s1483 + $0xa0] sm:$0xff]
        %v1505 = vld [vmem:[%s1483 + $0xa8] sm:$0xff]
        %v1506 = vld [vmem:[%s1483 + $0xb0] sm:$0xff]
        %v1507 = vld [vmem:[%s1483 + $0xb8] sm:$0xff]
        %v1508 = vld [vmem:[%s1483 + $0xc0] sm:$0xff]
        %v1509 = vld [vmem:[%s1483 + $0xc8] sm:$0xff]
        %v1510 = vld [vmem:[%s1483 + $0xd0] sm:$0xff]
        %v1511 = vld [vmem:[%s1483 + $0xd8] sm:$0xff]
        %v1512 = vld [vmem:[%s1483 + $0xe0] sm:$0xff]
        %v1513 = vld [vmem:[%s1483 + $0xe8] sm:$0xff]
        %v1514 = vld [vmem:[%s1483 + $0xf0] sm:$0xff]
        %v1515 = vld [vmem:[%s1483 + $0xf8] sm:$0xff]
        %v1548 = vunpack.c.l.b16 %v1484
        %v1549 = vunpack.c.h.b16 %v1484
        %v1550 = vunpack.c.l.b16 %v1485
        %v1551 = vunpack.c.h.b16 %v1485
        %v1552 = vunpack.c.l.b16 %v1486
        %v1553 = vunpack.c.h.b16 %v1486
        %v1554 = vunpack.c.l.b16 %v1487
        %v1555 = vunpack.c.h.b16 %v1487
        %v1556 = vunpack.c.l.b16 %v1488
        %v1557 = vunpack.c.h.b16 %v1488
        %v1558 = vunpack.c.l.b16 %v1489
        %v1559 = vunpack.c.h.b16 %v1489
        %v1560 = vunpack.c.l.b16 %v1490
        %v1561 = vunpack.c.h.b16 %v1490
        %v1562 = vunpack.c.l.b16 %v1491
        %v1563 = vunpack.c.h.b16 %v1491
        %v1564 = vunpack.c.l.b16 %v1492
        %v1565 = vunpack.c.h.b16 %v1492
        %v1566 = vunpack.c.l.b16 %v1493
        %v1567 = vunpack.c.h.b16 %v1493
        %v1568 = vunpack.c.l.b16 %v1494
        %v1569 = vunpack.c.h.b16 %v1494
        %v1570 = vunpack.c.l.b16 %v1495
        %v1571 = vunpack.c.h.b16 %v1495
        %v1572 = vunpack.c.l.b16 %v1496
        %v1573 = vunpack.c.h.b16 %v1496
        %v1574 = vunpack.c.l.b16 %v1497
        %v1575 = vunpack.c.h.b16 %v1497
        %v1576 = vunpack.c.l.b16 %v1498
        %v1577 = vunpack.c.h.b16 %v1498
        %v1578 = vunpack.c.l.b16 %v1499
        %v1579 = vunpack.c.h.b16 %v1499
        %v1580 = vunpack.c.l.b16 %v1500
        %v1581 = vunpack.c.h.b16 %v1500
        %v1582 = vunpack.c.l.b16 %v1501
        %v1583 = vunpack.c.h.b16 %v1501
        %v1584 = vunpack.c.l.b16 %v1502
        %v1585 = vunpack.c.h.b16 %v1502
        %v1586 = vunpack.c.l.b16 %v1503
        %v1587 = vunpack.c.h.b16 %v1503
        %v1588 = vunpack.c.l.b16 %v1504
        %v1589 = vunpack.c.h.b16 %v1504
        %v1590 = vunpack.c.l.b16 %v1505
        %v1591 = vunpack.c.h.b16 %v1505
        %v1592 = vunpack.c.l.b16 %v1506
        %v1593 = vunpack.c.h.b16 %v1506
        %v1594 = vunpack.c.l.b16 %v1507
        %v1595 = vunpack.c.h.b16 %v1507
        %v1596 = vunpack.c.l.b16 %v1508
        %v1597 = vunpack.c.h.b16 %v1508
        %v1598 = vunpack.c.l.b16 %v1509
        %v1599 = vunpack.c.h.b16 %v1509
        %v1600 = vunpack.c.l.b16 %v1510
        %v1601 = vunpack.c.h.b16 %v1510
        %v1602 = vunpack.c.l.b16 %v1511
        %v1603 = vunpack.c.h.b16 %v1511
        %v1604 = vunpack.c.l.b16 %v1512
        %v1605 = vunpack.c.h.b16 %v1512
        %v1606 = vunpack.c.l.b16 %v1513
        %v1607 = vunpack.c.h.b16 %v1513
        %v1608 = vunpack.c.l.b16 %v1514
        %v1609 = vunpack.c.h.b16 %v1514
        %v1610 = vunpack.c.l.b16 %v1515
        %v1611 = vunpack.c.h.b16 %v1515
        %v1612 = vpack.c.b16 %v1550, %v1548
        %v1613 = vpack.c.b16 %v1551, %v1549
        %v1614 = vpack.c.b16 %v1554, %v1552
        %v1615 = vpack.c.b16 %v1555, %v1553
        %v1616 = vpack.c.b16 %v1558, %v1556
        %v1617 = vpack.c.b16 %v1559, %v1557
        %v1618 = vpack.c.b16 %v1562, %v1560
        %v1619 = vpack.c.b16 %v1563, %v1561
        %v1620 = vpack.c.b16 %v1566, %v1564
        %v1621 = vpack.c.b16 %v1567, %v1565
        %v1622 = vpack.c.b16 %v1570, %v1568
        %v1623 = vpack.c.b16 %v1571, %v1569
        %v1624 = vpack.c.b16 %v1574, %v1572
        %v1625 = vpack.c.b16 %v1575, %v1573
        %v1626 = vpack.c.b16 %v1578, %v1576
        %v1627 = vpack.c.b16 %v1579, %v1577
        %v1628 = vpack.c.b16 %v1582, %v1580
        %v1629 = vpack.c.b16 %v1583, %v1581
        %v1630 = vpack.c.b16 %v1586, %v1584
        %v1631 = vpack.c.b16 %v1587, %v1585
        %v1632 = vpack.c.b16 %v1590, %v1588
        %v1633 = vpack.c.b16 %v1591, %v1589
        %v1634 = vpack.c.b16 %v1594, %v1592
        %v1635 = vpack.c.b16 %v1595, %v1593
        %v1636 = vpack.c.b16 %v1598, %v1596
        %v1637 = vpack.c.b16 %v1599, %v1597
        %v1638 = vpack.c.b16 %v1602, %v1600
        %v1639 = vpack.c.b16 %v1603, %v1601
        %v1640 = vpack.c.b16 %v1606, %v1604
        %v1641 = vpack.c.b16 %v1607, %v1605
        %v1642 = vpack.c.b16 %v1610, %v1608
        %v1643 = vpack.c.b16 %v1611, %v1609
        %1676 = vmatpush.bf16.msra.mxu0 %v1626
        %1677 = vmatpush.bf16.msra.mxu0 %v1624
        %1678 = vmatpush.bf16.msra.mxu0 %v1622
        %1679 = vmatpush.bf16.msra.mxu0 %v1620
        %1680 = vmatpush.bf16.msra.mxu0 %v1618
        %1681 = vmatpush.bf16.msra.mxu0 %v1616
        %1682 = vmatpush.bf16.msra.mxu0 %v1614
        %1683 = vmatpush.bf16.msra.mxu0 %v1612
        %1684 = vmatmul.bf16.gmra.mxu0 %v1481
        %v1685 = vpop.f32.mrf.mxu0
        %v1686 = vadd.f32 0.0, %v1685
        %v1687 = vpop.f32.mrf.mxu0
        %1688 = vdwg.mxu0
        %1689 = vmatpush.bf16.msra.mxu0 %v1642
        %1690 = vmatpush.bf16.msra.mxu0 %v1640
        %1691 = vmatpush.bf16.msra.mxu0 %v1638
        %1692 = vmatpush.bf16.msra.mxu0 %v1636
        %1693 = vmatpush.bf16.msra.mxu0 %v1634
        %1694 = vmatpush.bf16.msra.mxu0 %v1632
        %1695 = vmatpush.bf16.msra.mxu0 %v1630
        %1696 = vmatpush.bf16.msra.mxu0 %v1628
        %1697 = vmatmul.bf16.gmra.mxu0 %v1482
        %v1698 = vpop.f32.mrf.mxu0
        %v1699 = vadd.f32 %v1686, %v1698
        %v1700 = vpop.f32.mrf.mxu0
        %1701 = vdwg.mxu0
        %1702 = vmatpush.bf16.msra.mxu0 %v1627
        %1703 = vmatpush.bf16.msra.mxu0 %v1625
        %1704 = vmatpush.bf16.msra.mxu0 %v1623
        %1705 = vmatpush.bf16.msra.mxu0 %v1621
        %1706 = vmatpush.bf16.msra.mxu0 %v1619
        %1707 = vmatpush.bf16.msra.mxu0 %v1617
        %1708 = vmatpush.bf16.msra.mxu0 %v1615
        %1709 = vmatpush.bf16.msra.mxu0 %v1613
        %1710 = vmatmul.bf16.gmra.mxu0 %v1481
        %v1711 = vpop.f32.mrf.mxu0
        %v1712 = vadd.f32 0.0, %v1711
        %v1713 = vpop.f32.mrf.mxu0
        %1714 = vdwg.mxu0
        %1715 = vmatpush.bf16.msra.mxu0 %v1643
        %1716 = vmatpush.bf16.msra.mxu0 %v1641
        %1717 = vmatpush.bf16.msra.mxu0 %v1639
        %1718 = vmatpush.bf16.msra.mxu0 %v1637
        %1719 = vmatpush.bf16.msra.mxu0 %v1635
        %1720 = vmatpush.bf16.msra.mxu0 %v1633
        %1721 = vmatpush.bf16.msra.mxu0 %v1631
        %1722 = vmatpush.bf16.msra.mxu0 %v1629
        %1723 = vmatmul.bf16.gmra.mxu0 %v1482
        %v1724 = vpop.f32.mrf.mxu0
        %v1725 = vadd.f32 %v1712, %v1724
        %v1726 = vpop.f32.mrf.mxu0
        %1727 = vdwg.mxu0
        %v1728 = vadd.f32 %v1421, %v1699
        %v1729 = vadd.f32 %v1447, %v1725
        %s1730 = scalar_lea.vmem %s3, 12
        %v1731 = vld [vmem:[%s1730] sm:$0xf]
        %v1733 = vsel %vm896, %v1731, 0
        %1735 = vmatpush.bf16.msra.mxu0 0
        %1736 = vmatpush.bf16.msra.mxu0 0
        %1737 = vmatpush.bf16.msra.mxu0 0
        %1738 = vmatpush.bf16.msra.mxu0 0
        %1739 = vmatpush.bf16.msra.mxu0 0
        %1740 = vmatpush.bf16.msra.mxu0 0
        %1741 = vmatpush.bf16.msra.mxu0 0
        %1742 = vmatpush.bf16.msra.mxu0 %v893
        %1743 = vmatmul.bf16.gmra.mxu0 %v1733
        %v1744 = vpop.f32.mrf.mxu0
        %v1745 = vadd.f32 0.0, %v1744
        %v1746 = vpop.f32.mrf.mxu0
        %1747 = vdwg.mxu0
        %1748 = vmatpush.bf16.msra.mxu0 0
        %1749 = vmatpush.bf16.msra.mxu0 0
        %1750 = vmatpush.bf16.msra.mxu0 0
        %1751 = vmatpush.bf16.msra.mxu0 0
        %1752 = vmatpush.bf16.msra.mxu0 0
        %1753 = vmatpush.bf16.msra.mxu0 0
        %1754 = vmatpush.bf16.msra.mxu0 0
        %1755 = vmatpush.bf16.msra.mxu0 %v894
        %1756 = vmatmul.bf16.gmra.mxu0 %v1733
        %v1757 = vpop.f32.mrf.mxu0
        %v1758 = vadd.f32 0.0, %v1757
        %v1759 = vpop.f32.mrf.mxu0
        %1760 = vdwg.mxu0
        %v1761 = vpack.c.bf16 %v1745, %v1745
        %v1762 = vpack.c.bf16 %v1758, %v1758
        %s1763 = scalar_lea.vmem [#allocation2], 768
        %v1764 = vld [vmem:[%s1763] sm:$0xff]
        %v1765 = vld [vmem:[%s1763 + $0x8] sm:$0xff]
        %v1766 = vld [vmem:[%s1763 + $0x10] sm:$0xff]
        %v1767 = vld [vmem:[%s1763 + $0x18] sm:$0xff]
        %v1768 = vld [vmem:[%s1763 + $0x20] sm:$0xff]
        %v1769 = vld [vmem:[%s1763 + $0x28] sm:$0xff]
        %v1770 = vld [vmem:[%s1763 + $0x30] sm:$0xff]
        %v1771 = vld [vmem:[%s1763 + $0x38] sm:$0xff]
        %v1772 = vld [vmem:[%s1763 + $0x40] sm:$0xff]
        %v1773 = vld [vmem:[%s1763 + $0x48] sm:$0xff]
        %v1774 = vld [vmem:[%s1763 + $0x50] sm:$0xff]
        %v1775 = vld [vmem:[%s1763 + $0x58] sm:$0xff]
        %v1776 = vld [vmem:[%s1763 + $0x60] sm:$0xff]
        %v1777 = vld [vmem:[%s1763 + $0x68] sm:$0xff]
        %v1778 = vld [vmem:[%s1763 + $0x70] sm:$0xff]
        %v1779 = vld [vmem:[%s1763 + $0x78] sm:$0xff]
        %v1780 = vld [vmem:[%s1763 + $0x80] sm:$0xff]
        %v1781 = vld [vmem:[%s1763 + $0x88] sm:$0xff]
        %v1782 = vld [vmem:[%s1763 + $0x90] sm:$0xff]
        %v1783 = vld [vmem:[%s1763 + $0x98] sm:$0xff]
        %v1784 = vld [vmem:[%s1763 + $0xa0] sm:$0xff]
        %v1785 = vld [vmem:[%s1763 + $0xa8] sm:$0xff]
        %v1786 = vld [vmem:[%s1763 + $0xb0] sm:$0xff]
        %v1787 = vld [vmem:[%s1763 + $0xb8] sm:$0xff]
        %v1788 = vld [vmem:[%s1763 + $0xc0] sm:$0xff]
        %v1789 = vld [vmem:[%s1763 + $0xc8] sm:$0xff]
        %v1790 = vld [vmem:[%s1763 + $0xd0] sm:$0xff]
        %v1791 = vld [vmem:[%s1763 + $0xd8] sm:$0xff]
        %v1792 = vld [vmem:[%s1763 + $0xe0] sm:$0xff]
        %v1793 = vld [vmem:[%s1763 + $0xe8] sm:$0xff]
        %v1794 = vld [vmem:[%s1763 + $0xf0] sm:$0xff]
        %v1795 = vld [vmem:[%s1763 + $0xf8] sm:$0xff]
        %v1828 = vunpack.c.l.b16 %v1764
        %v1829 = vunpack.c.h.b16 %v1764
        %v1830 = vunpack.c.l.b16 %v1765
        %v1831 = vunpack.c.h.b16 %v1765
        %v1832 = vunpack.c.l.b16 %v1766
        %v1833 = vunpack.c.h.b16 %v1766
        %v1834 = vunpack.c.l.b16 %v1767
        %v1835 = vunpack.c.h.b16 %v1767
        %v1836 = vunpack.c.l.b16 %v1768
        %v1837 = vunpack.c.h.b16 %v1768
        %v1838 = vunpack.c.l.b16 %v1769
        %v1839 = vunpack.c.h.b16 %v1769
        %v1840 = vunpack.c.l.b16 %v1770
        %v1841 = vunpack.c.h.b16 %v1770
        %v1842 = vunpack.c.l.b16 %v1771
        %v1843 = vunpack.c.h.b16 %v1771
        %v1844 = vunpack.c.l.b16 %v1772
        %v1845 = vunpack.c.h.b16 %v1772
        %v1846 = vunpack.c.l.b16 %v1773
        %v1847 = vunpack.c.h.b16 %v1773
        %v1848 = vunpack.c.l.b16 %v1774
        %v1849 = vunpack.c.h.b16 %v1774
        %v1850 = vunpack.c.l.b16 %v1775
        %v1851 = vunpack.c.h.b16 %v1775
        %v1852 = vunpack.c.l.b16 %v1776
        %v1853 = vunpack.c.h.b16 %v1776
        %v1854 = vunpack.c.l.b16 %v1777
        %v1855 = vunpack.c.h.b16 %v1777
        %v1856 = vunpack.c.l.b16 %v1778
        %v1857 = vunpack.c.h.b16 %v1778
        %v1858 = vunpack.c.l.b16 %v1779
        %v1859 = vunpack.c.h.b16 %v1779
        %v1860 = vunpack.c.l.b16 %v1780
        %v1861 = vunpack.c.h.b16 %v1780
        %v1862 = vunpack.c.l.b16 %v1781
        %v1863 = vunpack.c.h.b16 %v1781
        %v1864 = vunpack.c.l.b16 %v1782
        %v1865 = vunpack.c.h.b16 %v1782
        %v1866 = vunpack.c.l.b16 %v1783
        %v1867 = vunpack.c.h.b16 %v1783
        %v1868 = vunpack.c.l.b16 %v1784
        %v1869 = vunpack.c.h.b16 %v1784
        %v1870 = vunpack.c.l.b16 %v1785
        %v1871 = vunpack.c.h.b16 %v1785
        %v1872 = vunpack.c.l.b16 %v1786
        %v1873 = vunpack.c.h.b16 %v1786
        %v1874 = vunpack.c.l.b16 %v1787
        %v1875 = vunpack.c.h.b16 %v1787
        %v1876 = vunpack.c.l.b16 %v1788
        %v1877 = vunpack.c.h.b16 %v1788
        %v1878 = vunpack.c.l.b16 %v1789
        %v1879 = vunpack.c.h.b16 %v1789
        %v1880 = vunpack.c.l.b16 %v1790
        %v1881 = vunpack.c.h.b16 %v1790
        %v1882 = vunpack.c.l.b16 %v1791
        %v1883 = vunpack.c.h.b16 %v1791
        %v1884 = vunpack.c.l.b16 %v1792
        %v1885 = vunpack.c.h.b16 %v1792
        %v1886 = vunpack.c.l.b16 %v1793
        %v1887 = vunpack.c.h.b16 %v1793
        %v1888 = vunpack.c.l.b16 %v1794
        %v1889 = vunpack.c.h.b16 %v1794
        %v1890 = vunpack.c.l.b16 %v1795
        %v1891 = vunpack.c.h.b16 %v1795
        %v1892 = vpack.c.b16 %v1830, %v1828
        %v1893 = vpack.c.b16 %v1831, %v1829
        %v1894 = vpack.c.b16 %v1834, %v1832
        %v1895 = vpack.c.b16 %v1835, %v1833
        %v1896 = vpack.c.b16 %v1838, %v1836
        %v1897 = vpack.c.b16 %v1839, %v1837
        %v1898 = vpack.c.b16 %v1842, %v1840
        %v1899 = vpack.c.b16 %v1843, %v1841
        %v1900 = vpack.c.b16 %v1846, %v1844
        %v1901 = vpack.c.b16 %v1847, %v1845
        %v1902 = vpack.c.b16 %v1850, %v1848
        %v1903 = vpack.c.b16 %v1851, %v1849
        %v1904 = vpack.c.b16 %v1854, %v1852
        %v1905 = vpack.c.b16 %v1855, %v1853
        %v1906 = vpack.c.b16 %v1858, %v1856
        %v1907 = vpack.c.b16 %v1859, %v1857
        %v1908 = vpack.c.b16 %v1862, %v1860
        %v1909 = vpack.c.b16 %v1863, %v1861
        %v1910 = vpack.c.b16 %v1866, %v1864
        %v1911 = vpack.c.b16 %v1867, %v1865
        %v1912 = vpack.c.b16 %v1870, %v1868
        %v1913 = vpack.c.b16 %v1871, %v1869
        %v1914 = vpack.c.b16 %v1874, %v1872
        %v1915 = vpack.c.b16 %v1875, %v1873
        %v1916 = vpack.c.b16 %v1878, %v1876
        %v1917 = vpack.c.b16 %v1879, %v1877
        %v1918 = vpack.c.b16 %v1882, %v1880
        %v1919 = vpack.c.b16 %v1883, %v1881
        %v1920 = vpack.c.b16 %v1886, %v1884
        %v1921 = vpack.c.b16 %v1887, %v1885
        %v1922 = vpack.c.b16 %v1890, %v1888
        %v1923 = vpack.c.b16 %v1891, %v1889
        %1956 = vmatpush.bf16.msra.mxu0 %v1906
        %1957 = vmatpush.bf16.msra.mxu0 %v1904
        %1958 = vmatpush.bf16.msra.mxu0 %v1902
        %1959 = vmatpush.bf16.msra.mxu0 %v1900
        %1960 = vmatpush.bf16.msra.mxu0 %v1898
        %1961 = vmatpush.bf16.msra.mxu0 %v1896
        %1962 = vmatpush.bf16.msra.mxu0 %v1894
        %1963 = vmatpush.bf16.msra.mxu0 %v1892
        %1964 = vmatmul.bf16.gmra.mxu0 %v1761
        %v1965 = vpop.f32.mrf.mxu0
        %v1966 = vadd.f32 0.0, %v1965
        %v1967 = vpop.f32.mrf.mxu0
        %1968 = vdwg.mxu0
        %1969 = vmatpush.bf16.msra.mxu0 %v1922
        %1970 = vmatpush.bf16.msra.mxu0 %v1920
        %1971 = vmatpush.bf16.msra.mxu0 %v1918
        %1972 = vmatpush.bf16.msra.mxu0 %v1916
        %1973 = vmatpush.bf16.msra.mxu0 %v1914
        %1974 = vmatpush.bf16.msra.mxu0 %v1912
        %1975 = vmatpush.bf16.msra.mxu0 %v1910
        %1976 = vmatpush.bf16.msra.mxu0 %v1908
        %1977 = vmatmul.bf16.gmra.mxu0 %v1762
        %v1978 = vpop.f32.mrf.mxu0
        %v1979 = vadd.f32 %v1966, %v1978
        %v1980 = vpop.f32.mrf.mxu0
        %1981 = vdwg.mxu0
        %1982 = vmatpush.bf16.msra.mxu0 %v1907
        %1983 = vmatpush.bf16.msra.mxu0 %v1905
        %1984 = vmatpush.bf16.msra.mxu0 %v1903
        %1985 = vmatpush.bf16.msra.mxu0 %v1901
        %1986 = vmatpush.bf16.msra.mxu0 %v1899
        %1987 = vmatpush.bf16.msra.mxu0 %v1897
        %1988 = vmatpush.bf16.msra.mxu0 %v1895
        %1989 = vmatpush.bf16.msra.mxu0 %v1893
        %1990 = vmatmul.bf16.gmra.mxu0 %v1761
        %v1991 = vpop.f32.mrf.mxu0
        %v1992 = vadd.f32 0.0, %v1991
        %v1993 = vpop.f32.mrf.mxu0
        %1994 = vdwg.mxu0
        %1995 = vmatpush.bf16.msra.mxu0 %v1923
        %1996 = vmatpush.bf16.msra.mxu0 %v1921
        %1997 = vmatpush.bf16.msra.mxu0 %v1919
        %1998 = vmatpush.bf16.msra.mxu0 %v1917
        %1999 = vmatpush.bf16.msra.mxu0 %v1915
        %2000 = vmatpush.bf16.msra.mxu0 %v1913
        %2001 = vmatpush.bf16.msra.mxu0 %v1911
        %2002 = vmatpush.bf16.msra.mxu0 %v1909
        %2003 = vmatmul.bf16.gmra.mxu0 %v1762
        %v2004 = vpop.f32.mrf.mxu0
        %v2005 = vadd.f32 %v1992, %v2004
        %v2006 = vpop.f32.mrf.mxu0
        %2007 = vdwg.mxu0
        %v2008 = vadd.f32 %v1728, %v1979
        %v2009 = vadd.f32 %v1729, %v2005
        %vm2010 = vcmp.gt.f32.partialorder %v2008, 0.0
        %vm2011 = vcmp.gt.f32.partialorder %v2009, 0.0
        %v2012 = vmul.f32 %v2008, 0.2
        %v2013 = vmul.f32 %v2009, 0.2
        %v2014 = vsel %vm2010, %v2008, %v2012
        %v2015 = vsel %vm2011, %v2009, %v2013
        %v2016 = vpack.c.bf16 %v2014, %v2014
        %v2017 = vpack.c.bf16 %v2015, %v2015
        %v2018 = vld [vmem:[%s5] sm:$0x3]
        %vm2019 = vcmask 64512
        %v2021 = vsel %vm2019, %v2018, 0
        %vm2023 = vcmask 1043456
        %v2025 = vsel %vm2023, %v2016, 0
        %v2028 = vsel %vm2023, %v2017, 0
        %2030 = vmatpush.bf16.msra.mxu0 0
        %2031 = vmatpush.bf16.msra.mxu0 0
        %2032 = vmatpush.bf16.msra.mxu0 0
        %2033 = vmatpush.bf16.msra.mxu0 0
        %2034 = vmatpush.bf16.msra.mxu0 0
        %2035 = vmatpush.bf16.msra.mxu0 0
        %2036 = vmatpush.bf16.msra.mxu0 0
        %2037 = vmatpush.bf16.msra.mxu0 %v2025
        %2038 = vmatmul.bf16.gmra.mxu0 %v2021
        %v2039 = vpop.f32.mrf.mxu0
        %v2040 = vadd.f32 0.0, %v2039
        %v2041 = vpop.f32.mrf.mxu0
        %2042 = vdwg.mxu0
        %2043 = vmatpush.bf16.msra.mxu0 0
        %2044 = vmatpush.bf16.msra.mxu0 0
        %2045 = vmatpush.bf16.msra.mxu0 0
        %2046 = vmatpush.bf16.msra.mxu0 0
        %2047 = vmatpush.bf16.msra.mxu0 0
        %2048 = vmatpush.bf16.msra.mxu0 0
        %2049 = vmatpush.bf16.msra.mxu0 0
        %2050 = vmatpush.bf16.msra.mxu0 %v2028
        %2051 = vmatmul.bf16.gmra.mxu0 %v2021
        %v2052 = vpop.f32.mrf.mxu0
        %v2053 = vadd.f32 0.0, %v2052
        %v2054 = vpop.f32.mrf.mxu0
        %2055 = vdwg.mxu0
        %v2056 = vpack.c.bf16 %v2040, %v2040
        %v2057 = vpack.c.bf16 %v2053, %v2053
        %v2058 = vld [vmem:[#allocation4] sm:$0xff]
        %v2059 = vld [vmem:[#allocation4 + $0x8] sm:$0xff]
        %v2060 = vld [vmem:[#allocation4 + $0x10] sm:$0xff]
        %v2061 = vld [vmem:[#allocation4 + $0x18] sm:$0xff]
        %v2062 = vld [vmem:[#allocation4 + $0x20] sm:$0xff]
        %v2063 = vld [vmem:[#allocation4 + $0x28] sm:$0xff]
        %v2064 = vld [vmem:[#allocation4 + $0x30] sm:$0xff]
        %v2065 = vld [vmem:[#allocation4 + $0x38] sm:$0xff]
        %v2066 = vld [vmem:[#allocation4 + $0x40] sm:$0xff]
        %v2067 = vld [vmem:[#allocation4 + $0x48] sm:$0xff]
        %v2068 = vld [vmem:[#allocation4 + $0x50] sm:$0xff]
        %v2069 = vld [vmem:[#allocation4 + $0x58] sm:$0xff]
        %v2070 = vld [vmem:[#allocation4 + $0x60] sm:$0xff]
        %v2071 = vld [vmem:[#allocation4 + $0x68] sm:$0xff]
        %v2072 = vld [vmem:[#allocation4 + $0x70] sm:$0xff]
        %v2073 = vld [vmem:[#allocation4 + $0x78] sm:$0xff]
        %v2074 = vld [vmem:[#allocation4 + $0x80] sm:$0xff]
        %v2075 = vld [vmem:[#allocation4 + $0x88] sm:$0xff]
        %v2076 = vld [vmem:[#allocation4 + $0x90] sm:$0xff]
        %v2077 = vld [vmem:[#allocation4 + $0x98] sm:$0xff]
        %v2078 = vld [vmem:[#allocation4 + $0xa0] sm:$0xff]
        %v2079 = vld [vmem:[#allocation4 + $0xa8] sm:$0xff]
        %v2080 = vld [vmem:[#allocation4 + $0xb0] sm:$0xff]
        %v2081 = vld [vmem:[#allocation4 + $0xb8] sm:$0xff]
        %v2082 = vld [vmem:[#allocation4 + $0xc0] sm:$0xff]
        %v2083 = vld [vmem:[#allocation4 + $0xc8] sm:$0xff]
        %v2084 = vld [vmem:[#allocation4 + $0xd0] sm:$0xff]
        %v2085 = vld [vmem:[#allocation4 + $0xd8] sm:$0xff]
        %v2086 = vld [vmem:[#allocation4 + $0xe0] sm:$0xff]
        %v2087 = vld [vmem:[#allocation4 + $0xe8] sm:$0xff]
        %v2088 = vld [vmem:[#allocation4 + $0xf0] sm:$0xff]
        %v2089 = vld [vmem:[#allocation4 + $0xf8] sm:$0xff]
        %s2090 = scalar_lea.vmem %s5, 2
        %v2091 = vld [vmem:[%s2090] sm:$0x3]
        %v2093 = vsel %vm2019, %v2091, 0
        %2095 = vmatpush.bf16.msra.mxu0 0
        %2096 = vmatpush.bf16.msra.mxu0 0
        %2097 = vmatpush.bf16.msra.mxu0 0
        %2098 = vmatpush.bf16.msra.mxu0 0
        %2099 = vmatpush.bf16.msra.mxu0 0
        %2100 = vmatpush.bf16.msra.mxu0 0
        %2101 = vmatpush.bf16.msra.mxu0 0
        %2102 = vmatpush.bf16.msra.mxu0 %v2025
        %2103 = vmatmul.bf16.gmra.mxu0 %v2093
        %v2104 = vpop.f32.mrf.mxu0
        %v2105 = vadd.f32 0.0, %v2104
        %v2106 = vpop.f32.mrf.mxu0
        %2107 = vdwg.mxu0
        %2108 = vmatpush.bf16.msra.mxu0 0
        %2109 = vmatpush.bf16.msra.mxu0 0
        %2110 = vmatpush.bf16.msra.mxu0 0
        %2111 = vmatpush.bf16.msra.mxu0 0
        %2112 = vmatpush.bf16.msra.mxu0 0
        %2113 = vmatpush.bf16.msra.mxu0 0
        %2114 = vmatpush.bf16.msra.mxu0 0
        %2115 = vmatpush.bf16.msra.mxu0 %v2028
        %2116 = vmatmul.bf16.gmra.mxu0 %v2093
        %v2117 = vpop.f32.mrf.mxu0
        %v2118 = vadd.f32 0.0, %v2117
        %v2119 = vpop.f32.mrf.mxu0
        %2120 = vdwg.mxu0
        %v2121 = vpack.c.bf16 %v2105, %v2105
        %v2122 = vpack.c.bf16 %v2118, %v2118
        %s2123 = scalar_lea.vmem [#allocation4], 256
        %v2124 = vld [vmem:[%s2123] sm:$0xff]
        %v2125 = vld [vmem:[%s2123 + $0x8] sm:$0xff]
        %v2126 = vld [vmem:[%s2123 + $0x10] sm:$0xff]
        %v2127 = vld [vmem:[%s2123 + $0x18] sm:$0xff]
        %v2128 = vld [vmem:[%s2123 + $0x20] sm:$0xff]
        %v2129 = vld [vmem:[%s2123 + $0x28] sm:$0xff]
        %v2130 = vld [vmem:[%s2123 + $0x30] sm:$0xff]
        %v2131 = vld [vmem:[%s2123 + $0x38] sm:$0xff]
        %v2132 = vld [vmem:[%s2123 + $0x40] sm:$0xff]
        %v2133 = vld [vmem:[%s2123 + $0x48] sm:$0xff]
        %v2134 = vld [vmem:[%s2123 + $0x50] sm:$0xff]
        %v2135 = vld [vmem:[%s2123 + $0x58] sm:$0xff]
        %v2136 = vld [vmem:[%s2123 + $0x60] sm:$0xff]
        %v2137 = vld [vmem:[%s2123 + $0x68] sm:$0xff]
        %v2138 = vld [vmem:[%s2123 + $0x70] sm:$0xff]
        %v2139 = vld [vmem:[%s2123 + $0x78] sm:$0xff]
        %v2140 = vld [vmem:[%s2123 + $0x80] sm:$0xff]
        %v2141 = vld [vmem:[%s2123 + $0x88] sm:$0xff]
        %v2142 = vld [vmem:[%s2123 + $0x90] sm:$0xff]
        %v2143 = vld [vmem:[%s2123 + $0x98] sm:$0xff]
        %v2144 = vld [vmem:[%s2123 + $0xa0] sm:$0xff]
        %v2145 = vld [vmem:[%s2123 + $0xa8] sm:$0xff]
        %v2146 = vld [vmem:[%s2123 + $0xb0] sm:$0xff]
        %v2147 = vld [vmem:[%s2123 + $0xb8] sm:$0xff]
        %v2148 = vld [vmem:[%s2123 + $0xc0] sm:$0xff]
        %v2149 = vld [vmem:[%s2123 + $0xc8] sm:$0xff]
        %v2150 = vld [vmem:[%s2123 + $0xd0] sm:$0xff]
        %v2151 = vld [vmem:[%s2123 + $0xd8] sm:$0xff]
        %v2152 = vld [vmem:[%s2123 + $0xe0] sm:$0xff]
        %v2153 = vld [vmem:[%s2123 + $0xe8] sm:$0xff]
        %v2154 = vld [vmem:[%s2123 + $0xf0] sm:$0xff]
        %v2155 = vld [vmem:[%s2123 + $0xf8] sm:$0xff]
        %v2188 = vunpack.c.l.b16 %v2124
        %v2189 = vunpack.c.h.b16 %v2124
        %v2190 = vunpack.c.l.b16 %v2125
        %v2191 = vunpack.c.h.b16 %v2125
        %v2192 = vunpack.c.l.b16 %v2126
        %v2193 = vunpack.c.h.b16 %v2126
        %v2194 = vunpack.c.l.b16 %v2127
        %v2195 = vunpack.c.h.b16 %v2127
        %v2196 = vunpack.c.l.b16 %v2128
        %v2197 = vunpack.c.h.b16 %v2128
        %v2198 = vunpack.c.l.b16 %v2129
        %v2199 = vunpack.c.h.b16 %v2129
        %v2200 = vunpack.c.l.b16 %v2130
        %v2201 = vunpack.c.h.b16 %v2130
        %v2202 = vunpack.c.l.b16 %v2131
        %v2203 = vunpack.c.h.b16 %v2131
        %v2204 = vunpack.c.l.b16 %v2132
        %v2205 = vunpack.c.h.b16 %v2132
        %v2206 = vunpack.c.l.b16 %v2133
        %v2207 = vunpack.c.h.b16 %v2133
        %v2208 = vunpack.c.l.b16 %v2134
        %v2209 = vunpack.c.h.b16 %v2134
        %v2210 = vunpack.c.l.b16 %v2135
        %v2211 = vunpack.c.h.b16 %v2135
        %v2212 = vunpack.c.l.b16 %v2136
        %v2213 = vunpack.c.h.b16 %v2136
        %v2214 = vunpack.c.l.b16 %v2137
        %v2215 = vunpack.c.h.b16 %v2137
        %v2216 = vunpack.c.l.b16 %v2138
        %v2217 = vunpack.c.h.b16 %v2138
        %v2218 = vunpack.c.l.b16 %v2139
        %v2219 = vunpack.c.h.b16 %v2139
        %v2220 = vunpack.c.l.b16 %v2140
        %v2221 = vunpack.c.h.b16 %v2140
        %v2222 = vunpack.c.l.b16 %v2141
        %v2223 = vunpack.c.h.b16 %v2141
        %v2224 = vunpack.c.l.b16 %v2142
        %v2225 = vunpack.c.h.b16 %v2142
        %v2226 = vunpack.c.l.b16 %v2143
        %v2227 = vunpack.c.h.b16 %v2143
        %v2228 = vunpack.c.l.b16 %v2144
        %v2229 = vunpack.c.h.b16 %v2144
        %v2230 = vunpack.c.l.b16 %v2145
        %v2231 = vunpack.c.h.b16 %v2145
        %v2232 = vunpack.c.l.b16 %v2146
        %v2233 = vunpack.c.h.b16 %v2146
        %v2234 = vunpack.c.l.b16 %v2147
        %v2235 = vunpack.c.h.b16 %v2147
        %v2236 = vunpack.c.l.b16 %v2148
        %v2237 = vunpack.c.h.b16 %v2148
        %v2238 = vunpack.c.l.b16 %v2149
        %v2239 = vunpack.c.h.b16 %v2149
        %v2240 = vunpack.c.l.b16 %v2150
        %v2241 = vunpack.c.h.b16 %v2150
        %v2242 = vunpack.c.l.b16 %v2151
        %v2243 = vunpack.c.h.b16 %v2151
        %v2244 = vunpack.c.l.b16 %v2152
        %v2245 = vunpack.c.h.b16 %v2152
        %v2246 = vunpack.c.l.b16 %v2153
        %v2247 = vunpack.c.h.b16 %v2153
        %v2248 = vunpack.c.l.b16 %v2154
        %v2249 = vunpack.c.h.b16 %v2154
        %v2250 = vunpack.c.l.b16 %v2155
        %v2251 = vunpack.c.h.b16 %v2155
        %v2252 = vpack.c.b16 %v2190, %v2188
        %v2253 = vpack.c.b16 %v2191, %v2189
        %v2254 = vpack.c.b16 %v2194, %v2192
        %v2255 = vpack.c.b16 %v2195, %v2193
        %v2256 = vpack.c.b16 %v2198, %v2196
        %v2257 = vpack.c.b16 %v2199, %v2197
        %v2258 = vpack.c.b16 %v2202, %v2200
        %v2259 = vpack.c.b16 %v2203, %v2201
        %v2260 = vpack.c.b16 %v2206, %v2204
        %v2261 = vpack.c.b16 %v2207, %v2205
        %v2262 = vpack.c.b16 %v2210, %v2208
        %v2263 = vpack.c.b16 %v2211, %v2209
        %v2264 = vpack.c.b16 %v2214, %v2212
        %v2265 = vpack.c.b16 %v2215, %v2213
        %v2266 = vpack.c.b16 %v2218, %v2216
        %v2267 = vpack.c.b16 %v2219, %v2217
        %v2268 = vpack.c.b16 %v2222, %v2220
        %v2269 = vpack.c.b16 %v2223, %v2221
        %v2270 = vpack.c.b16 %v2226, %v2224
        %v2271 = vpack.c.b16 %v2227, %v2225
        %v2272 = vpack.c.b16 %v2230, %v2228
        %v2273 = vpack.c.b16 %v2231, %v2229
        %v2274 = vpack.c.b16 %v2234, %v2232
        %v2275 = vpack.c.b16 %v2235, %v2233
        %v2276 = vpack.c.b16 %v2238, %v2236
        %v2277 = vpack.c.b16 %v2239, %v2237
        %v2278 = vpack.c.b16 %v2242, %v2240
        %v2279 = vpack.c.b16 %v2243, %v2241
        %v2280 = vpack.c.b16 %v2246, %v2244
        %v2281 = vpack.c.b16 %v2247, %v2245
        %v2282 = vpack.c.b16 %v2250, %v2248
        %v2283 = vpack.c.b16 %v2251, %v2249
        %2316 = vmatpush.bf16.msra.mxu0 %v2266
        %2317 = vmatpush.bf16.msra.mxu0 %v2264
        %2318 = vmatpush.bf16.msra.mxu0 %v2262
        %2319 = vmatpush.bf16.msra.mxu0 %v2260
        %2320 = vmatpush.bf16.msra.mxu0 %v2258
        %2321 = vmatpush.bf16.msra.mxu0 %v2256
        %2322 = vmatpush.bf16.msra.mxu0 %v2254
        %2323 = vmatpush.bf16.msra.mxu0 %v2252
        %2324 = vmatmul.bf16.gmra.mxu0 %v2121
        %v2325 = vpop.f32.mrf.mxu0
        %v2326 = vadd.f32 0.0, %v2325
        %v2327 = vpop.f32.mrf.mxu0
        %2328 = vdwg.mxu0
        %2329 = vmatpush.bf16.msra.mxu0 %v2282
        %2330 = vmatpush.bf16.msra.mxu0 %v2280
        %2331 = vmatpush.bf16.msra.mxu0 %v2278
        %2332 = vmatpush.bf16.msra.mxu0 %v2276
        %2333 = vmatpush.bf16.msra.mxu0 %v2274
        %2334 = vmatpush.bf16.msra.mxu0 %v2272
        %2335 = vmatpush.bf16.msra.mxu0 %v2270
        %2336 = vmatpush.bf16.msra.mxu0 %v2268
        %2337 = vmatmul.bf16.gmra.mxu0 %v2122
        %v2338 = vpop.f32.mrf.mxu0
        %v2339 = vadd.f32 %v2326, %v2338
        %v2340 = vpop.f32.mrf.mxu0
        %2341 = vdwg.mxu0
        %2342 = vmatpush.bf16.msra.mxu0 %v2267
        %2343 = vmatpush.bf16.msra.mxu0 %v2265
        %2344 = vmatpush.bf16.msra.mxu0 %v2263
        %2345 = vmatpush.bf16.msra.mxu0 %v2261
        %2346 = vmatpush.bf16.msra.mxu0 %v2259
        %2347 = vmatpush.bf16.msra.mxu0 %v2257
        %2348 = vmatpush.bf16.msra.mxu0 %v2255
        %2349 = vmatpush.bf16.msra.mxu0 %v2253
        %2350 = vmatmul.bf16.gmra.mxu0 %v2121
        %v2351 = vpop.f32.mrf.mxu0
        %v2352 = vadd.f32 0.0, %v2351
        %v2353 = vpop.f32.mrf.mxu0
        %2354 = vdwg.mxu0
        %2355 = vmatpush.bf16.msra.mxu0 %v2283
        %2356 = vmatpush.bf16.msra.mxu0 %v2281
        %2357 = vmatpush.bf16.msra.mxu0 %v2279
        %2358 = vmatpush.bf16.msra.mxu0 %v2277
        %2359 = vmatpush.bf16.msra.mxu0 %v2275
        %2360 = vmatpush.bf16.msra.mxu0 %v2273
        %2361 = vmatpush.bf16.msra.mxu0 %v2271
        %2362 = vmatpush.bf16.msra.mxu0 %v2269
        %2363 = vmatmul.bf16.gmra.mxu0 %v2122
        %v2364 = vpop.f32.mrf.mxu0
        %v2365 = vadd.f32 %v2352, %v2364
        %v2366 = vpop.f32.mrf.mxu0
        %2367 = vdwg.mxu0
        %v2400 = vunpack.c.l.b16 %v2058
        %v2401 = vunpack.c.h.b16 %v2058
        %v2402 = vunpack.c.l.b16 %v2059
        %v2403 = vunpack.c.h.b16 %v2059
        %v2404 = vunpack.c.l.b16 %v2060
        %v2405 = vunpack.c.h.b16 %v2060
        %v2406 = vunpack.c.l.b16 %v2061
        %v2407 = vunpack.c.h.b16 %v2061
        %v2408 = vunpack.c.l.b16 %v2062
        %v2409 = vunpack.c.h.b16 %v2062
        %v2410 = vunpack.c.l.b16 %v2063
        %v2411 = vunpack.c.h.b16 %v2063
        %v2412 = vunpack.c.l.b16 %v2064
        %v2413 = vunpack.c.h.b16 %v2064
        %v2414 = vunpack.c.l.b16 %v2065
        %v2415 = vunpack.c.h.b16 %v2065
        %v2416 = vunpack.c.l.b16 %v2066
        %v2417 = vunpack.c.h.b16 %v2066
        %v2418 = vunpack.c.l.b16 %v2067
        %v2419 = vunpack.c.h.b16 %v2067
        %v2420 = vunpack.c.l.b16 %v2068
        %v2421 = vunpack.c.h.b16 %v2068
        %v2422 = vunpack.c.l.b16 %v2069
        %v2423 = vunpack.c.h.b16 %v2069
        %v2424 = vunpack.c.l.b16 %v2070
        %v2425 = vunpack.c.h.b16 %v2070
        %v2426 = vunpack.c.l.b16 %v2071
        %v2427 = vunpack.c.h.b16 %v2071
        %v2428 = vunpack.c.l.b16 %v2072
        %v2429 = vunpack.c.h.b16 %v2072
        %v2430 = vunpack.c.l.b16 %v2073
        %v2431 = vunpack.c.h.b16 %v2073
        %v2432 = vunpack.c.l.b16 %v2074
        %v2433 = vunpack.c.h.b16 %v2074
        %v2434 = vunpack.c.l.b16 %v2075
        %v2435 = vunpack.c.h.b16 %v2075
        %v2436 = vunpack.c.l.b16 %v2076
        %v2437 = vunpack.c.h.b16 %v2076
        %v2438 = vunpack.c.l.b16 %v2077
        %v2439 = vunpack.c.h.b16 %v2077
        %v2440 = vunpack.c.l.b16 %v2078
        %v2441 = vunpack.c.h.b16 %v2078
        %v2442 = vunpack.c.l.b16 %v2079
        %v2443 = vunpack.c.h.b16 %v2079
        %v2444 = vunpack.c.l.b16 %v2080
        %v2445 = vunpack.c.h.b16 %v2080
        %v2446 = vunpack.c.l.b16 %v2081
        %v2447 = vunpack.c.h.b16 %v2081
        %v2448 = vunpack.c.l.b16 %v2082
        %v2449 = vunpack.c.h.b16 %v2082
        %v2450 = vunpack.c.l.b16 %v2083
        %v2451 = vunpack.c.h.b16 %v2083
        %v2452 = vunpack.c.l.b16 %v2084
        %v2453 = vunpack.c.h.b16 %v2084
        %v2454 = vunpack.c.l.b16 %v2085
        %v2455 = vunpack.c.h.b16 %v2085
        %v2456 = vunpack.c.l.b16 %v2086
        %v2457 = vunpack.c.h.b16 %v2086
        %v2458 = vunpack.c.l.b16 %v2087
        %v2459 = vunpack.c.h.b16 %v2087
        %v2460 = vunpack.c.l.b16 %v2088
        %v2461 = vunpack.c.h.b16 %v2088
        %v2462 = vunpack.c.l.b16 %v2089
        %v2463 = vunpack.c.h.b16 %v2089
        %v2464 = vpack.c.b16 %v2402, %v2400
        %v2465 = vpack.c.b16 %v2403, %v2401
        %v2466 = vpack.c.b16 %v2406, %v2404
        %v2467 = vpack.c.b16 %v2407, %v2405
        %v2468 = vpack.c.b16 %v2410, %v2408
        %v2469 = vpack.c.b16 %v2411, %v2409
        %v2470 = vpack.c.b16 %v2414, %v2412
        %v2471 = vpack.c.b16 %v2415, %v2413
        %v2472 = vpack.c.b16 %v2418, %v2416
        %v2473 = vpack.c.b16 %v2419, %v2417
        %v2474 = vpack.c.b16 %v2422, %v2420
        %v2475 = vpack.c.b16 %v2423, %v2421
        %v2476 = vpack.c.b16 %v2426, %v2424
        %v2477 = vpack.c.b16 %v2427, %v2425
        %v2478 = vpack.c.b16 %v2430, %v2428
        %v2479 = vpack.c.b16 %v2431, %v2429
        %v2480 = vpack.c.b16 %v2434, %v2432
        %v2481 = vpack.c.b16 %v2435, %v2433
        %v2482 = vpack.c.b16 %v2438, %v2436
        %v2483 = vpack.c.b16 %v2439, %v2437
        %v2484 = vpack.c.b16 %v2442, %v2440
        %v2485 = vpack.c.b16 %v2443, %v2441
        %v2486 = vpack.c.b16 %v2446, %v2444
        %v2487 = vpack.c.b16 %v2447, %v2445
        %v2488 = vpack.c.b16 %v2450, %v2448
        %v2489 = vpack.c.b16 %v2451, %v2449
        %v2490 = vpack.c.b16 %v2454, %v2452
        %v2491 = vpack.c.b16 %v2455, %v2453
        %v2492 = vpack.c.b16 %v2458, %v2456
        %v2493 = vpack.c.b16 %v2459, %v2457
        %v2494 = vpack.c.b16 %v2462, %v2460
        %v2495 = vpack.c.b16 %v2463, %v2461
        %2528 = vmatpush.bf16.msra.mxu0 %v2478
        %2529 = vmatpush.bf16.msra.mxu0 %v2476
        %2530 = vmatpush.bf16.msra.mxu0 %v2474
        %2531 = vmatpush.bf16.msra.mxu0 %v2472
        %2532 = vmatpush.bf16.msra.mxu0 %v2470
        %2533 = vmatpush.bf16.msra.mxu0 %v2468
        %2534 = vmatpush.bf16.msra.mxu0 %v2466
        %2535 = vmatpush.bf16.msra.mxu0 %v2464
        %2536 = vmatmul.bf16.gmra.mxu0 %v2056
        %v2537 = vpop.f32.mrf.mxu0
        %v2538 = vadd.f32 %v2339, %v2537
        %v2539 = vpop.f32.mrf.mxu0
        %2540 = vdwg.mxu0
        %2541 = vmatpush.bf16.msra.mxu0 %v2494
        %2542 = vmatpush.bf16.msra.mxu0 %v2492
        %2543 = vmatpush.bf16.msra.mxu0 %v2490
        %2544 = vmatpush.bf16.msra.mxu0 %v2488
        %2545 = vmatpush.bf16.msra.mxu0 %v2486
        %2546 = vmatpush.bf16.msra.mxu0 %v2484
        %2547 = vmatpush.bf16.msra.mxu0 %v2482
        %2548 = vmatpush.bf16.msra.mxu0 %v2480
        %2549 = vmatmul.bf16.gmra.mxu0 %v2057
        %v2550 = vpop.f32.mrf.mxu0
        %v2551 = vadd.f32 %v2538, %v2550
        %v2552 = vpop.f32.mrf.mxu0
        %2553 = vdwg.mxu0
        %2554 = vmatpush.bf16.msra.mxu0 %v2479
        %2555 = vmatpush.bf16.msra.mxu0 %v2477
        %2556 = vmatpush.bf16.msra.mxu0 %v2475
        %2557 = vmatpush.bf16.msra.mxu0 %v2473
        %2558 = vmatpush.bf16.msra.mxu0 %v2471
        %2559 = vmatpush.bf16.msra.mxu0 %v2469
        %2560 = vmatpush.bf16.msra.mxu0 %v2467
        %2561 = vmatpush.bf16.msra.mxu0 %v2465
        %2562 = vmatmul.bf16.gmra.mxu0 %v2056
        %v2563 = vpop.f32.mrf.mxu0
        %v2564 = vadd.f32 %v2365, %v2563
        %v2565 = vpop.f32.mrf.mxu0
        %2566 = vdwg.mxu0
        %2567 = vmatpush.bf16.msra.mxu0 %v2495
        %2568 = vmatpush.bf16.msra.mxu0 %v2493
        %2569 = vmatpush.bf16.msra.mxu0 %v2491
        %2570 = vmatpush.bf16.msra.mxu0 %v2489
        %2571 = vmatpush.bf16.msra.mxu0 %v2487
        %2572 = vmatpush.bf16.msra.mxu0 %v2485
        %2573 = vmatpush.bf16.msra.mxu0 %v2483
        %2574 = vmatpush.bf16.msra.mxu0 %v2481
        %2575 = vmatmul.bf16.gmra.mxu0 %v2057
        %v2576 = vpop.f32.mrf.mxu0
        %v2577 = vadd.f32 %v2564, %v2576
        %v2578 = vpop.f32.mrf.mxu0
        %2579 = vdwg.mxu0
        %s2580 = scalar_lea.vmem %s5, 4
        %v2581 = vld [vmem:[%s2580] sm:$0x3]
        %v2583 = vsel %vm2019, %v2581, 0
        %2585 = vmatpush.bf16.msra.mxu0 0
        %2586 = vmatpush.bf16.msra.mxu0 0
        %2587 = vmatpush.bf16.msra.mxu0 0
        %2588 = vmatpush.bf16.msra.mxu0 0
        %2589 = vmatpush.bf16.msra.mxu0 0
        %2590 = vmatpush.bf16.msra.mxu0 0
        %2591 = vmatpush.bf16.msra.mxu0 0
        %2592 = vmatpush.bf16.msra.mxu0 %v2025
        %2593 = vmatmul.bf16.gmra.mxu0 %v2583
        %v2594 = vpop.f32.mrf.mxu0
        %v2595 = vadd.f32 0.0, %v2594
        %v2596 = vpop.f32.mrf.mxu0
        %2597 = vdwg.mxu0
        %2598 = vmatpush.bf16.msra.mxu0 0
        %2599 = vmatpush.bf16.msra.mxu0 0
        %2600 = vmatpush.bf16.msra.mxu0 0
        %2601 = vmatpush.bf16.msra.mxu0 0
        %2602 = vmatpush.bf16.msra.mxu0 0
        %2603 = vmatpush.bf16.msra.mxu0 0
        %2604 = vmatpush.bf16.msra.mxu0 0
        %2605 = vmatpush.bf16.msra.mxu0 %v2028
        %2606 = vmatmul.bf16.gmra.mxu0 %v2583
        %v2607 = vpop.f32.mrf.mxu0
        %v2608 = vadd.f32 0.0, %v2607
        %v2609 = vpop.f32.mrf.mxu0
        %2610 = vdwg.mxu0
        %v2611 = vpack.c.bf16 %v2595, %v2595
        %v2612 = vpack.c.bf16 %v2608, %v2608
        %s2613 = scalar_lea.vmem [#allocation4], 512
        %v2614 = vld [vmem:[%s2613] sm:$0xff]
        %v2615 = vld [vmem:[%s2613 + $0x8] sm:$0xff]
        %v2616 = vld [vmem:[%s2613 + $0x10] sm:$0xff]
        %v2617 = vld [vmem:[%s2613 + $0x18] sm:$0xff]
        %v2618 = vld [vmem:[%s2613 + $0x20] sm:$0xff]
        %v2619 = vld [vmem:[%s2613 + $0x28] sm:$0xff]
        %v2620 = vld [vmem:[%s2613 + $0x30] sm:$0xff]
        %v2621 = vld [vmem:[%s2613 + $0x38] sm:$0xff]
        %v2622 = vld [vmem:[%s2613 + $0x40] sm:$0xff]
        %v2623 = vld [vmem:[%s2613 + $0x48] sm:$0xff]
        %v2624 = vld [vmem:[%s2613 + $0x50] sm:$0xff]
        %v2625 = vld [vmem:[%s2613 + $0x58] sm:$0xff]
        %v2626 = vld [vmem:[%s2613 + $0x60] sm:$0xff]
        %v2627 = vld [vmem:[%s2613 + $0x68] sm:$0xff]
        %v2628 = vld [vmem:[%s2613 + $0x70] sm:$0xff]
        %v2629 = vld [vmem:[%s2613 + $0x78] sm:$0xff]
        %v2630 = vld [vmem:[%s2613 + $0x80] sm:$0xff]
        %v2631 = vld [vmem:[%s2613 + $0x88] sm:$0xff]
        %v2632 = vld [vmem:[%s2613 + $0x90] sm:$0xff]
        %v2633 = vld [vmem:[%s2613 + $0x98] sm:$0xff]
        %v2634 = vld [vmem:[%s2613 + $0xa0] sm:$0xff]
        %v2635 = vld [vmem:[%s2613 + $0xa8] sm:$0xff]
        %v2636 = vld [vmem:[%s2613 + $0xb0] sm:$0xff]
        %v2637 = vld [vmem:[%s2613 + $0xb8] sm:$0xff]
        %v2638 = vld [vmem:[%s2613 + $0xc0] sm:$0xff]
        %v2639 = vld [vmem:[%s2613 + $0xc8] sm:$0xff]
        %v2640 = vld [vmem:[%s2613 + $0xd0] sm:$0xff]
        %v2641 = vld [vmem:[%s2613 + $0xd8] sm:$0xff]
        %v2642 = vld [vmem:[%s2613 + $0xe0] sm:$0xff]
        %v2643 = vld [vmem:[%s2613 + $0xe8] sm:$0xff]
        %v2644 = vld [vmem:[%s2613 + $0xf0] sm:$0xff]
        %v2645 = vld [vmem:[%s2613 + $0xf8] sm:$0xff]
        %v2678 = vunpack.c.l.b16 %v2614
        %v2679 = vunpack.c.h.b16 %v2614
        %v2680 = vunpack.c.l.b16 %v2615
        %v2681 = vunpack.c.h.b16 %v2615
        %v2682 = vunpack.c.l.b16 %v2616
        %v2683 = vunpack.c.h.b16 %v2616
        %v2684 = vunpack.c.l.b16 %v2617
        %v2685 = vunpack.c.h.b16 %v2617
        %v2686 = vunpack.c.l.b16 %v2618
        %v2687 = vunpack.c.h.b16 %v2618
        %v2688 = vunpack.c.l.b16 %v2619
        %v2689 = vunpack.c.h.b16 %v2619
        %v2690 = vunpack.c.l.b16 %v2620
        %v2691 = vunpack.c.h.b16 %v2620
        %v2692 = vunpack.c.l.b16 %v2621
        %v2693 = vunpack.c.h.b16 %v2621
        %v2694 = vunpack.c.l.b16 %v2622
        %v2695 = vunpack.c.h.b16 %v2622
        %v2696 = vunpack.c.l.b16 %v2623
        %v2697 = vunpack.c.h.b16 %v2623
        %v2698 = vunpack.c.l.b16 %v2624
        %v2699 = vunpack.c.h.b16 %v2624
        %v2700 = vunpack.c.l.b16 %v2625
        %v2701 = vunpack.c.h.b16 %v2625
        %v2702 = vunpack.c.l.b16 %v2626
        %v2703 = vunpack.c.h.b16 %v2626
        %v2704 = vunpack.c.l.b16 %v2627
        %v2705 = vunpack.c.h.b16 %v2627
        %v2706 = vunpack.c.l.b16 %v2628
        %v2707 = vunpack.c.h.b16 %v2628
        %v2708 = vunpack.c.l.b16 %v2629
        %v2709 = vunpack.c.h.b16 %v2629
        %v2710 = vunpack.c.l.b16 %v2630
        %v2711 = vunpack.c.h.b16 %v2630
        %v2712 = vunpack.c.l.b16 %v2631
        %v2713 = vunpack.c.h.b16 %v2631
        %v2714 = vunpack.c.l.b16 %v2632
        %v2715 = vunpack.c.h.b16 %v2632
        %v2716 = vunpack.c.l.b16 %v2633
        %v2717 = vunpack.c.h.b16 %v2633
        %v2718 = vunpack.c.l.b16 %v2634
        %v2719 = vunpack.c.h.b16 %v2634
        %v2720 = vunpack.c.l.b16 %v2635
        %v2721 = vunpack.c.h.b16 %v2635
        %v2722 = vunpack.c.l.b16 %v2636
        %v2723 = vunpack.c.h.b16 %v2636
        %v2724 = vunpack.c.l.b16 %v2637
        %v2725 = vunpack.c.h.b16 %v2637
        %v2726 = vunpack.c.l.b16 %v2638
        %v2727 = vunpack.c.h.b16 %v2638
        %v2728 = vunpack.c.l.b16 %v2639
        %v2729 = vunpack.c.h.b16 %v2639
        %v2730 = vunpack.c.l.b16 %v2640
        %v2731 = vunpack.c.h.b16 %v2640
        %v2732 = vunpack.c.l.b16 %v2641
        %v2733 = vunpack.c.h.b16 %v2641
        %v2734 = vunpack.c.l.b16 %v2642
        %v2735 = vunpack.c.h.b16 %v2642
        %v2736 = vunpack.c.l.b16 %v2643
        %v2737 = vunpack.c.h.b16 %v2643
        %v2738 = vunpack.c.l.b16 %v2644
        %v2739 = vunpack.c.h.b16 %v2644
        %v2740 = vunpack.c.l.b16 %v2645
        %v2741 = vunpack.c.h.b16 %v2645
        %v2742 = vpack.c.b16 %v2680, %v2678
        %v2743 = vpack.c.b16 %v2681, %v2679
        %v2744 = vpack.c.b16 %v2684, %v2682
        %v2745 = vpack.c.b16 %v2685, %v2683
        %v2746 = vpack.c.b16 %v2688, %v2686
        %v2747 = vpack.c.b16 %v2689, %v2687
        %v2748 = vpack.c.b16 %v2692, %v2690
        %v2749 = vpack.c.b16 %v2693, %v2691
        %v2750 = vpack.c.b16 %v2696, %v2694
        %v2751 = vpack.c.b16 %v2697, %v2695
        %v2752 = vpack.c.b16 %v2700, %v2698
        %v2753 = vpack.c.b16 %v2701, %v2699
        %v2754 = vpack.c.b16 %v2704, %v2702
        %v2755 = vpack.c.b16 %v2705, %v2703
        %v2756 = vpack.c.b16 %v2708, %v2706
        %v2757 = vpack.c.b16 %v2709, %v2707
        %v2758 = vpack.c.b16 %v2712, %v2710
        %v2759 = vpack.c.b16 %v2713, %v2711
        %v2760 = vpack.c.b16 %v2716, %v2714
        %v2761 = vpack.c.b16 %v2717, %v2715
        %v2762 = vpack.c.b16 %v2720, %v2718
        %v2763 = vpack.c.b16 %v2721, %v2719
        %v2764 = vpack.c.b16 %v2724, %v2722
        %v2765 = vpack.c.b16 %v2725, %v2723
        %v2766 = vpack.c.b16 %v2728, %v2726
        %v2767 = vpack.c.b16 %v2729, %v2727
        %v2768 = vpack.c.b16 %v2732, %v2730
        %v2769 = vpack.c.b16 %v2733, %v2731
        %v2770 = vpack.c.b16 %v2736, %v2734
        %v2771 = vpack.c.b16 %v2737, %v2735
        %v2772 = vpack.c.b16 %v2740, %v2738
        %v2773 = vpack.c.b16 %v2741, %v2739
        %2806 = vmatpush.bf16.msra.mxu0 %v2756
        %2807 = vmatpush.bf16.msra.mxu0 %v2754
        %2808 = vmatpush.bf16.msra.mxu0 %v2752
        %2809 = vmatpush.bf16.msra.mxu0 %v2750
        %2810 = vmatpush.bf16.msra.mxu0 %v2748
        %2811 = vmatpush.bf16.msra.mxu0 %v2746
        %2812 = vmatpush.bf16.msra.mxu0 %v2744
        %2813 = vmatpush.bf16.msra.mxu0 %v2742
        %2814 = vmatmul.bf16.gmra.mxu0 %v2611
        %v2815 = vpop.f32.mrf.mxu0
        %v2816 = vadd.f32 0.0, %v2815
        %v2817 = vpop.f32.mrf.mxu0
        %2818 = vdwg.mxu0
        %2819 = vmatpush.bf16.msra.mxu0 %v2772
        %2820 = vmatpush.bf16.msra.mxu0 %v2770
        %2821 = vmatpush.bf16.msra.mxu0 %v2768
        %2822 = vmatpush.bf16.msra.mxu0 %v2766
        %2823 = vmatpush.bf16.msra.mxu0 %v2764
        %2824 = vmatpush.bf16.msra.mxu0 %v2762
        %2825 = vmatpush.bf16.msra.mxu0 %v2760
        %2826 = vmatpush.bf16.msra.mxu0 %v2758
        %2827 = vmatmul.bf16.gmra.mxu0 %v2612
        %v2828 = vpop.f32.mrf.mxu0
        %v2829 = vadd.f32 %v2816, %v2828
        %v2830 = vpop.f32.mrf.mxu0
        %2831 = vdwg.mxu0
        %2832 = vmatpush.bf16.msra.mxu0 %v2757
        %2833 = vmatpush.bf16.msra.mxu0 %v2755
        %2834 = vmatpush.bf16.msra.mxu0 %v2753
        %2835 = vmatpush.bf16.msra.mxu0 %v2751
        %2836 = vmatpush.bf16.msra.mxu0 %v2749
        %2837 = vmatpush.bf16.msra.mxu0 %v2747
        %2838 = vmatpush.bf16.msra.mxu0 %v2745
        %2839 = vmatpush.bf16.msra.mxu0 %v2743
        %2840 = vmatmul.bf16.gmra.mxu0 %v2611
        %v2841 = vpop.f32.mrf.mxu0
        %v2842 = vadd.f32 0.0, %v2841
        %v2843 = vpop.f32.mrf.mxu0
        %2844 = vdwg.mxu0
        %2845 = vmatpush.bf16.msra.mxu0 %v2773
        %2846 = vmatpush.bf16.msra.mxu0 %v2771
        %2847 = vmatpush.bf16.msra.mxu0 %v2769
        %2848 = vmatpush.bf16.msra.mxu0 %v2767
        %2849 = vmatpush.bf16.msra.mxu0 %v2765
        %2850 = vmatpush.bf16.msra.mxu0 %v2763
        %2851 = vmatpush.bf16.msra.mxu0 %v2761
        %2852 = vmatpush.bf16.msra.mxu0 %v2759
        %2853 = vmatmul.bf16.gmra.mxu0 %v2612
        %v2854 = vpop.f32.mrf.mxu0
        %v2855 = vadd.f32 %v2842, %v2854
        %v2856 = vpop.f32.mrf.mxu0
        %2857 = vdwg.mxu0
        %v2858 = vadd.f32 %v2551, %v2829
        %v2859 = vadd.f32 %v2577, %v2855
        %s2860 = scalar_lea.vmem %s5, 6
        %v2861 = vld [vmem:[%s2860] sm:$0x3]
        %v2863 = vsel %vm2019, %v2861, 0
        %2865 = vmatpush.bf16.msra.mxu0 0
        %2866 = vmatpush.bf16.msra.mxu0 0
        %2867 = vmatpush.bf16.msra.mxu0 0
        %2868 = vmatpush.bf16.msra.mxu0 0
        %2869 = vmatpush.bf16.msra.mxu0 0
        %2870 = vmatpush.bf16.msra.mxu0 0
        %2871 = vmatpush.bf16.msra.mxu0 0
        %2872 = vmatpush.bf16.msra.mxu0 %v2025
        %2873 = vmatmul.bf16.gmra.mxu0 %v2863
        %v2874 = vpop.f32.mrf.mxu0
        %v2875 = vadd.f32 0.0, %v2874
        %v2876 = vpop.f32.mrf.mxu0
        %2877 = vdwg.mxu0
        %2878 = vmatpush.bf16.msra.mxu0 0
        %2879 = vmatpush.bf16.msra.mxu0 0
        %2880 = vmatpush.bf16.msra.mxu0 0
        %2881 = vmatpush.bf16.msra.mxu0 0
        %2882 = vmatpush.bf16.msra.mxu0 0
        %2883 = vmatpush.bf16.msra.mxu0 0
        %2884 = vmatpush.bf16.msra.mxu0 0
        %2885 = vmatpush.bf16.msra.mxu0 %v2028
        %2886 = vmatmul.bf16.gmra.mxu0 %v2863
        %v2887 = vpop.f32.mrf.mxu0
        %v2888 = vadd.f32 0.0, %v2887
        %v2889 = vpop.f32.mrf.mxu0
        %2890 = vdwg.mxu0
        %v2891 = vpack.c.bf16 %v2875, %v2875
        %v2892 = vpack.c.bf16 %v2888, %v2888
        %s2893 = scalar_lea.vmem [#allocation4], 768
        %v2894 = vld [vmem:[%s2893] sm:$0xff]
        %v2895 = vld [vmem:[%s2893 + $0x8] sm:$0xff]
        %v2896 = vld [vmem:[%s2893 + $0x10] sm:$0xff]
        %v2897 = vld [vmem:[%s2893 + $0x18] sm:$0xff]
        %v2898 = vld [vmem:[%s2893 + $0x20] sm:$0xff]
        %v2899 = vld [vmem:[%s2893 + $0x28] sm:$0xff]
        %v2900 = vld [vmem:[%s2893 + $0x30] sm:$0xff]
        %v2901 = vld [vmem:[%s2893 + $0x38] sm:$0xff]
        %v2902 = vld [vmem:[%s2893 + $0x40] sm:$0xff]
        %v2903 = vld [vmem:[%s2893 + $0x48] sm:$0xff]
        %v2904 = vld [vmem:[%s2893 + $0x50] sm:$0xff]
        %v2905 = vld [vmem:[%s2893 + $0x58] sm:$0xff]
        %v2906 = vld [vmem:[%s2893 + $0x60] sm:$0xff]
        %v2907 = vld [vmem:[%s2893 + $0x68] sm:$0xff]
        %v2908 = vld [vmem:[%s2893 + $0x70] sm:$0xff]
        %v2909 = vld [vmem:[%s2893 + $0x78] sm:$0xff]
        %v2910 = vld [vmem:[%s2893 + $0x80] sm:$0xff]
        %v2911 = vld [vmem:[%s2893 + $0x88] sm:$0xff]
        %v2912 = vld [vmem:[%s2893 + $0x90] sm:$0xff]
        %v2913 = vld [vmem:[%s2893 + $0x98] sm:$0xff]
        %v2914 = vld [vmem:[%s2893 + $0xa0] sm:$0xff]
        %v2915 = vld [vmem:[%s2893 + $0xa8] sm:$0xff]
        %v2916 = vld [vmem:[%s2893 + $0xb0] sm:$0xff]
        %v2917 = vld [vmem:[%s2893 + $0xb8] sm:$0xff]
        %v2918 = vld [vmem:[%s2893 + $0xc0] sm:$0xff]
        %v2919 = vld [vmem:[%s2893 + $0xc8] sm:$0xff]
        %v2920 = vld [vmem:[%s2893 + $0xd0] sm:$0xff]
        %v2921 = vld [vmem:[%s2893 + $0xd8] sm:$0xff]
        %v2922 = vld [vmem:[%s2893 + $0xe0] sm:$0xff]
        %v2923 = vld [vmem:[%s2893 + $0xe8] sm:$0xff]
        %v2924 = vld [vmem:[%s2893 + $0xf0] sm:$0xff]
        %v2925 = vld [vmem:[%s2893 + $0xf8] sm:$0xff]
        %v2958 = vunpack.c.l.b16 %v2894
        %v2959 = vunpack.c.h.b16 %v2894
        %v2960 = vunpack.c.l.b16 %v2895
        %v2961 = vunpack.c.h.b16 %v2895
        %v2962 = vunpack.c.l.b16 %v2896
        %v2963 = vunpack.c.h.b16 %v2896
        %v2964 = vunpack.c.l.b16 %v2897
        %v2965 = vunpack.c.h.b16 %v2897
        %v2966 = vunpack.c.l.b16 %v2898
        %v2967 = vunpack.c.h.b16 %v2898
        %v2968 = vunpack.c.l.b16 %v2899
        %v2969 = vunpack.c.h.b16 %v2899
        %v2970 = vunpack.c.l.b16 %v2900
        %v2971 = vunpack.c.h.b16 %v2900
        %v2972 = vunpack.c.l.b16 %v2901
        %v2973 = vunpack.c.h.b16 %v2901
        %v2974 = vunpack.c.l.b16 %v2902
        %v2975 = vunpack.c.h.b16 %v2902
        %v2976 = vunpack.c.l.b16 %v2903
        %v2977 = vunpack.c.h.b16 %v2903
        %v2978 = vunpack.c.l.b16 %v2904
        %v2979 = vunpack.c.h.b16 %v2904
        %v2980 = vunpack.c.l.b16 %v2905
        %v2981 = vunpack.c.h.b16 %v2905
        %v2982 = vunpack.c.l.b16 %v2906
        %v2983 = vunpack.c.h.b16 %v2906
        %v2984 = vunpack.c.l.b16 %v2907
        %v2985 = vunpack.c.h.b16 %v2907
        %v2986 = vunpack.c.l.b16 %v2908
        %v2987 = vunpack.c.h.b16 %v2908
        %v2988 = vunpack.c.l.b16 %v2909
        %v2989 = vunpack.c.h.b16 %v2909
        %v2990 = vunpack.c.l.b16 %v2910
        %v2991 = vunpack.c.h.b16 %v2910
        %v2992 = vunpack.c.l.b16 %v2911
        %v2993 = vunpack.c.h.b16 %v2911
        %v2994 = vunpack.c.l.b16 %v2912
        %v2995 = vunpack.c.h.b16 %v2912
        %v2996 = vunpack.c.l.b16 %v2913
        %v2997 = vunpack.c.h.b16 %v2913
        %v2998 = vunpack.c.l.b16 %v2914
        %v2999 = vunpack.c.h.b16 %v2914
        %v3000 = vunpack.c.l.b16 %v2915
        %v3001 = vunpack.c.h.b16 %v2915
        %v3002 = vunpack.c.l.b16 %v2916
        %v3003 = vunpack.c.h.b16 %v2916
        %v3004 = vunpack.c.l.b16 %v2917
        %v3005 = vunpack.c.h.b16 %v2917
        %v3006 = vunpack.c.l.b16 %v2918
        %v3007 = vunpack.c.h.b16 %v2918
        %v3008 = vunpack.c.l.b16 %v2919
        %v3009 = vunpack.c.h.b16 %v2919
        %v3010 = vunpack.c.l.b16 %v2920
        %v3011 = vunpack.c.h.b16 %v2920
        %v3012 = vunpack.c.l.b16 %v2921
        %v3013 = vunpack.c.h.b16 %v2921
        %v3014 = vunpack.c.l.b16 %v2922
        %v3015 = vunpack.c.h.b16 %v2922
        %v3016 = vunpack.c.l.b16 %v2923
        %v3017 = vunpack.c.h.b16 %v2923
        %v3018 = vunpack.c.l.b16 %v2924
        %v3019 = vunpack.c.h.b16 %v2924
        %v3020 = vunpack.c.l.b16 %v2925
        %v3021 = vunpack.c.h.b16 %v2925
        %v3022 = vpack.c.b16 %v2960, %v2958
        %v3023 = vpack.c.b16 %v2961, %v2959
        %v3024 = vpack.c.b16 %v2964, %v2962
        %v3025 = vpack.c.b16 %v2965, %v2963
        %v3026 = vpack.c.b16 %v2968, %v2966
        %v3027 = vpack.c.b16 %v2969, %v2967
        %v3028 = vpack.c.b16 %v2972, %v2970
        %v3029 = vpack.c.b16 %v2973, %v2971
        %v3030 = vpack.c.b16 %v2976, %v2974
        %v3031 = vpack.c.b16 %v2977, %v2975
        %v3032 = vpack.c.b16 %v2980, %v2978
        %v3033 = vpack.c.b16 %v2981, %v2979
        %v3034 = vpack.c.b16 %v2984, %v2982
        %v3035 = vpack.c.b16 %v2985, %v2983
        %v3036 = vpack.c.b16 %v2988, %v2986
        %v3037 = vpack.c.b16 %v2989, %v2987
        %v3038 = vpack.c.b16 %v2992, %v2990
        %v3039 = vpack.c.b16 %v2993, %v2991
        %v3040 = vpack.c.b16 %v2996, %v2994
        %v3041 = vpack.c.b16 %v2997, %v2995
        %v3042 = vpack.c.b16 %v3000, %v2998
        %v3043 = vpack.c.b16 %v3001, %v2999
        %v3044 = vpack.c.b16 %v3004, %v3002
        %v3045 = vpack.c.b16 %v3005, %v3003
        %v3046 = vpack.c.b16 %v3008, %v3006
        %v3047 = vpack.c.b16 %v3009, %v3007
        %v3048 = vpack.c.b16 %v3012, %v3010
        %v3049 = vpack.c.b16 %v3013, %v3011
        %v3050 = vpack.c.b16 %v3016, %v3014
        %v3051 = vpack.c.b16 %v3017, %v3015
        %v3052 = vpack.c.b16 %v3020, %v3018
        %v3053 = vpack.c.b16 %v3021, %v3019
        %3086 = vmatpush.bf16.msra.mxu0 %v3036
        %3087 = vmatpush.bf16.msra.mxu0 %v3034
        %3088 = vmatpush.bf16.msra.mxu0 %v3032
        %3089 = vmatpush.bf16.msra.mxu0 %v3030
        %3090 = vmatpush.bf16.msra.mxu0 %v3028
        %3091 = vmatpush.bf16.msra.mxu0 %v3026
        %3092 = vmatpush.bf16.msra.mxu0 %v3024
        %3093 = vmatpush.bf16.msra.mxu0 %v3022
        %3094 = vmatmul.bf16.gmra.mxu0 %v2891
        %v3095 = vpop.f32.mrf.mxu0
        %v3096 = vadd.f32 0.0, %v3095
        %v3097 = vpop.f32.mrf.mxu0
        %3098 = vdwg.mxu0
        %3099 = vmatpush.bf16.msra.mxu0 %v3052
        %3100 = vmatpush.bf16.msra.mxu0 %v3050
        %3101 = vmatpush.bf16.msra.mxu0 %v3048
        %3102 = vmatpush.bf16.msra.mxu0 %v3046
        %3103 = vmatpush.bf16.msra.mxu0 %v3044
        %3104 = vmatpush.bf16.msra.mxu0 %v3042
        %3105 = vmatpush.bf16.msra.mxu0 %v3040
        %3106 = vmatpush.bf16.msra.mxu0 %v3038
        %3107 = vmatmul.bf16.gmra.mxu0 %v2892
        %v3108 = vpop.f32.mrf.mxu0
        %v3109 = vadd.f32 %v3096, %v3108
        %v3110 = vpop.f32.mrf.mxu0
        %3111 = vdwg.mxu0
        %3112 = vmatpush.bf16.msra.mxu0 %v3037
        %3113 = vmatpush.bf16.msra.mxu0 %v3035
        %3114 = vmatpush.bf16.msra.mxu0 %v3033
        %3115 = vmatpush.bf16.msra.mxu0 %v3031
        %3116 = vmatpush.bf16.msra.mxu0 %v3029
        %3117 = vmatpush.bf16.msra.mxu0 %v3027
        %3118 = vmatpush.bf16.msra.mxu0 %v3025
        %3119 = vmatpush.bf16.msra.mxu0 %v3023
        %3120 = vmatmul.bf16.gmra.mxu0 %v2891
        %v3121 = vpop.f32.mrf.mxu0
        %v3122 = vadd.f32 0.0, %v3121
        %v3123 = vpop.f32.mrf.mxu0
        %3124 = vdwg.mxu0
        %3125 = vmatpush.bf16.msra.mxu0 %v3053
        %3126 = vmatpush.bf16.msra.mxu0 %v3051
        %3127 = vmatpush.bf16.msra.mxu0 %v3049
        %3128 = vmatpush.bf16.msra.mxu0 %v3047
        %3129 = vmatpush.bf16.msra.mxu0 %v3045
        %3130 = vmatpush.bf16.msra.mxu0 %v3043
        %3131 = vmatpush.bf16.msra.mxu0 %v3041
        %3132 = vmatpush.bf16.msra.mxu0 %v3039
        %3133 = vmatmul.bf16.gmra.mxu0 %v2892
        %v3134 = vpop.f32.mrf.mxu0
        %v3135 = vadd.f32 %v3122, %v3134
        %v3136 = vpop.f32.mrf.mxu0
        %3137 = vdwg.mxu0
        %v3138 = vadd.f32 %v2858, %v3109
        %v3139 = vadd.f32 %v2859, %v3135
        %vm3140 = vcmp.gt.f32.partialorder %v3138, 0.0
        %vm3141 = vcmp.gt.f32.partialorder %v3139, 0.0
        %v3142 = vmul.f32 %v3138, 0.2
        %v3143 = vmul.f32 %v3139, 0.2
        %v3144 = vsel %vm3140, %v3138, %v3142
        %v3145 = vsel %vm3141, %v3139, %v3143
        %v3146 = vld [vmem:[%s7] sm:$0xff]
        %3148 = vst [vmem:[#allocation1] ss:$2 sm:$0xff] %v3146
        %v3149 = vld.sshfl [vmem:[#allocation1] sm:$0xff pattern:$0x75316420]
        %v3150 = vld.sshfl [vmem:[#allocation1 + $0x8] sm:$0xff pattern:$0x75316420]
        %v3153 = vmul.f32 %v3144, %v3149
        %v3154 = vmul.f32 %v3145, %v3150
        %v3155 = vsel %vm2023, %v3153, 0.0
        %v3156 = vsel %vm2023, %v3154, 0.0
        %v3157 = vadd.f32 %v3155, %v3156
        %3158 = vadd.xlane.f32.xlu0 %v3157
        %v3159 = vpop.xlane.xlu0 %3158
        %v3160 = vsel %vm2023, %v3159, 0.0
        %v3161 = vrot.slane %v3160, 4
        %v3162 = vadd.f32 %v3160, %v3161
        %v3163 = vrot.slane %v3162, 2
        %v3164 = vadd.f32 %v3162, %v3163
        %v3165 = vrot.slane %v3164, 1
        %v3166 = vadd.f32 %v3164, %v3165
        %v3167 = vsub.f32 0.0, %v3166
        %v3168 = vmul.f32 %v3167, 1.442695
        %v3169 = vpow.pop %v3168
        %v3170 = vadd.f32 %v3169, 1.0
        %v3171 = vrcp.pop %v3170
        %vm3172 = vcmask 0
        %3173 = vst.msk [vmem:[%s335] sm:$0x1] %vm3172, %v3171
        %p3174 = scmp.lt.s32.totalorder %s21, 1
        %s3175 = scalar_select %p3174, %s21, 1
        %s3176 = scalar_lea.vmem %s8, %s3175
        // Predicated region
        $region61: #{discriminator_forward.1} parent=51 // pred_check
          %p3177 = pneg %p212
        $region62: #{discriminator_forward.1} parent=51 // pred_check_branch
          %3179 = sbr.rel (%p3177) target = $region64
        $region63: #{discriminator_forward.1} parent=51 // pred_region
          _
        $region64: #{discriminator_forward.1} parent=51 // pred_fallthru
          _
      $region52: #{discriminator_forward.1} parent=5 // pred_fallthru
        _
      %p3180 = scmp.le.s32.totalorder 2, %s16
      // Predicated region
      $region65: #{discriminator_forward.1} parent=5 // pred_check
        %p3181 = pneg %p3180
      $region66: #{discriminator_forward.1} parent=5 // pred_check_branch
        %3183 = sbr.rel (%p3181) target = $region68
      $region67: #{discriminator_forward.1} parent=5 // pred_region
        %s3184 = ssub.s32 %s16, 2
        // Predicated region
        $region69: #{discriminator_forward.1} parent=67 // pred_check
          %p3185 = pneg %p218
        $region70: #{discriminator_forward.1} parent=67 // pred_check_branch
          %3187 = sbr.rel (%p3185) target = $region72
        $region71: #{discriminator_forward.1} parent=67 // pred_region
          %p3188 = scmp.lt.s32.totalorder %s22, 1
          %s3189 = scalar_select %p3188, %s22, 1
          %s3190 = scalar_lea.vmem %s8, %s3189
        $region72: #{discriminator_forward.1} parent=67 // pred_fallthru
          _
      $region68: #{discriminator_forward.1} parent=5 // pred_fallthru
        _
    $region6: #{discriminator_forward.1} parent=1 // loop_footer
      %s20 = sadd.s32 1, %s16
    $region7: #{discriminator_forward.1} parent=1 // loop_footer_branch
      %15 = sbr.rel target = $region3
    $region8: #{discriminator_forward.1} parent=1 // loop_exit
      _
    %3191 = vsyncpa [#allocation3], 1
    %s3192 = scalar_lea.sflag [#allocation3], 1
    %3193 = vsyncpa %s3192, 1
    %3194 = vsyncpa [#allocation5], 1

</llo_original>
